<compile_context>
chip_gen: v5e
topology: v5e:2x2
jax: 0.10.0
libtpu: 0.0.40
codegen_flags: <defaults>
</compile_context>

<pallas_src>
import functools

import numpy as np
import jax
import jax.numpy as jnp
from jax.experimental import pallas as pl
from jax.experimental.pallas import tpu as pltpu


def _distill_attn_kernel(x_ref, wq_ref, wkv_ref, wp_ref, bp_ref,
                         sel_ref, selt_ref, mask_ref, o_ref, *, num_heads):
    """One grid step: Bt batch elements, fully fused q/k/v -> attention -> proj.

    x_ref   : (Bt, Np, C) bf16 tokens (Np = padded key count)
    wq_ref  : (C, C)   bf16, softmax scale already folded in
    wkv_ref : (C, 2C)  bf16, [Wk^T | Wv^T] packed
    wp_ref  : (C, C)   bf16 output projection
    bp_ref  : (1, C)   f32 proj bias
    sel_ref : (C, H)   f32 head selector (sel[c, h] = 1 iff channel c belongs to head h)
    selt_ref: (H, C)   f32 transposed head selector
    mask_ref: (Np, H)  f32 additive key mask (0 = valid, -1e30 = padded)
    o_ref   : (Bt, C)  f32 class-token output
    """
    Bt, Np, C = x_ref.shape
    H = num_heads

    x = x_ref[...]                                    # (Bt, Np, C) bf16
    x_flat = x.reshape(Bt * Np, C)

    # --- k / v: one wide bf16 MXU pass, f32 accumulation ---------------------
    kv = jnp.dot(x_flat, wkv_ref[...], preferred_element_type=jnp.float32)    # (Bt*Np, 2C)
    k = kv[:, :C].reshape(Bt, Np, C)
    v = kv[:, C:].reshape(Bt, Np, C)

    # --- q from the Bt CLS rows (full-height MXU matmul, scale pre-folded) ---
    q = jnp.dot(x[:, 0, :], wq_ref[...], preferred_element_type=jnp.float32)  # (Bt, C)

    # --- per-head scores: VPU broadcast-MAC + tiny head-selector matmul ------
    # scores[b, n, h] = sum_{c in head h} q[b, c] * k[b, n, c]
    qk = k * q[:, None, :]                                                     # (Bt, Np, C)
    scores = jnp.dot(qk.reshape(Bt * Np, C), sel_ref[...],
                     preferred_element_type=jnp.float32).reshape(Bt, Np, H)
    scores = scores + mask_ref[...]                    # mask padded key rows to -inf

    # --- softmax over the Np keys (f32; reciprocal on the EUP) ---------------
    m = jnp.max(scores, axis=1, keepdims=True)                                 # (Bt, 1, H)
    p = jnp.exp(scores - m)
    attn = p * pl.reciprocal(jnp.sum(p, axis=1, keepdims=True), approx=True)   # (Bt, Np, H)
    # TODO(synk): attn_drop / proj_drop are identity (p=0.0 defaults / eval mode) -> omitted.

    # --- weighted value sum, heads re-concatenated onto the lane axis --------
    attn_e = jnp.dot(attn.reshape(Bt * Np, H), selt_ref[...],
                     preferred_element_type=jnp.float32).reshape(Bt, Np, C)
    x_cls = jnp.sum(attn_e * v, axis=1)                                        # (Bt, C)

    # --- output projection + bias ---------------------------------------------
    out = jnp.dot(x_cls.astype(jnp.bfloat16), wp_ref[...],
                  preferred_element_type=jnp.float32) + bp_ref[...]
    o_ref[...] = out.astype(o_ref.dtype)


def _resident_spec(shape, weight_buffers):
    """Constant-index BlockSpec: the block stays resident across the batch grid."""
    ndim = len(shape)

    def index_map(b):
        return (0,) * ndim

    if weight_buffers is None:
        return pl.BlockSpec(shape, index_map)
    # Constant index_map => double buffering buys nothing; request 1 buffer.
    return pl.BlockSpec(shape, index_map, pipeline_mode=pl.Buffered(weight_buffers))


def distill_attention_forward(x, params, num_heads=8, block_batch=8,
                              weight_buffers=1):
    """x: (B, N, C) f32.  params: wq/wk/wv/wp as (C, C) = W^T (in, out layout),
    bp as (C,).  Returns (B, 1, C) f32 (same shape as the PyTorch module)."""
    B, N, C = x.shape
    H = num_heads
    assert C % H == 0, "dim must be divisible by num_heads"
    D = C // H
    scale = float(D) ** -0.5

    # ---- batch blocking: Bt elements per grid step ----------------------------
    Bt = max(1, min(B, block_batch))
    while B % Bt:
        Bt -= 1
    if B // Bt == 1 and Bt % 2 == 0:
        Bt //= 2                       # keep grid length >= 2 so both v7x TCs get work
    grid = (B // Bt,)

    # ---- pad keys to a bf16-friendly sublane multiple --------------------------
    Np = ((N + 15) // 16) * 16
    if Np != N:
        x = jnp.pad(x, ((0, 0), (0, Np - N), (0, 0)))
    x_bf = x.astype(jnp.bfloat16)
    # TODO(synk): for real model widths also choose C as a multiple of 128 (lane-dense);
    # C itself is not padded here because it must stay divisible by num_heads.

    # ---- parameter prep: bf16 MXU weights, scale folded into Wq, packed Wk|Wv ---
    wq = (params["wq"] * scale).astype(jnp.bfloat16)                               # (C, C)
    wkv = jnp.concatenate([params["wk"], params["wv"]], axis=1).astype(jnp.bfloat16)  # (C, 2C)
    wp = params["wp"].astype(jnp.bfloat16)                                         # (C, C)
    bp = params["bp"].reshape(1, C).astype(jnp.float32)

    # ---- head selectors / key mask: built ONCE here, not per grid step ----------
    head_of_c = np.arange(C) // D
    sel = jnp.asarray(head_of_c[:, None] == np.arange(H)[None, :],
                      dtype=jnp.float32)                                           # (C, H)
    sel_t = jnp.asarray(np.arange(H)[:, None] == head_of_c[None, :],
                        dtype=jnp.float32)                                         # (H, C)
    key_mask = jnp.where(jnp.arange(Np) < N, 0.0, -1e30).astype(jnp.float32)
    key_mask = jnp.broadcast_to(key_mask[:, None], (Np, H))                        # (Np, H)

    # ---- VMEM budget: only raise the scoped limit when actually needed ----------
    x_blk = Bt * Np * C * 2                              # bf16 x block (double-buffered)
    w_bytes = (4 * C * C) * 2 + (C + C * H + H * C + Np * H) * 4
    interm = 10 * Bt * Np * C * 4                        # generous f32 working-set bound
    n_wbuf = weight_buffers if weight_buffers else 2
    vmem_est = 2 * x_blk + 2 * Bt * C * 4 + n_wbuf * w_bytes + interm
    cp_kwargs = dict(dimension_semantics=("parallel",))
    if vmem_est > (32 << 20):
        cp_kwargs["vmem_limit_bytes"] = int(min(vmem_est, 64 << 20))   # v7x: 64 MiB physical

    kernel = functools.partial(_distill_attn_kernel, num_heads=H)
    out = pl.pallas_call(
        kernel,
        out_shape=jax.ShapeDtypeStruct((B, C), jnp.float32),
        grid_spec=pl.GridSpec(
            grid=grid,
            in_specs=[
                pl.BlockSpec((Bt, Np, C), lambda b: (b, 0, 0)),   # Bt batch elems / step
                _resident_spec((C, C), weight_buffers),           # Wq^T (pre-scaled)
                _resident_spec((C, 2 * C), weight_buffers),       # [Wk^T | Wv^T]
                _resident_spec((C, C), weight_buffers),           # Wproj^T
                _resident_spec((1, C), weight_buffers),           # proj bias
                _resident_spec((C, H), weight_buffers),           # head selector
                _resident_spec((H, C), weight_buffers),           # head selector^T
                _resident_spec((Np, H), weight_buffers),          # padded-key mask
            ],
            out_specs=pl.BlockSpec((Bt, C), lambda b: (b, 0)),    # lane-dense writeback
        ),
        compiler_params=pltpu.CompilerParams(**cp_kwargs),
    )(x_bf, wq, wkv, wp, bp, sel, sel_t, key_mask)

    return out[:, None, :]                                        # (B, 1, C)


# ---------------- pure-JAX reference (same semantics as the torch module) --------
def _ref_forward(x, raw, num_heads):
    B, N, C = x.shape
    D = C // num_heads
    scale = float(D) ** -0.5
    q = x[:, 0] @ raw["wq"].T                                     # (B, C)
    k = x @ raw["wk"].T                                           # (B, N, C)
    v = x @ raw["wv"].T                                           # (B, N, C)
    q = q.reshape(B, 1, num_heads, D).transpose(0, 2, 1, 3)       # (B, H, 1, D)
    k = k.reshape(B, N, num_heads, D).transpose(0, 2, 1, 3)       # (B, H, N, D)
    v = v.reshape(B, N, num_heads, D).transpose(0, 2, 1, 3)       # (B, H, N, D)
    attn = jax.nn.softmax((q * scale) @ jnp.swapaxes(k, -2, -1), axis=-1)
    x_cls = attn @ v                                              # (B, H, 1, D)
    x_cls = jnp.swapaxes(x_cls, 1, 2).reshape(B, 1, C)
    return x_cls @ raw["wp"].T + raw["bp"]


if __name__ == "__main__":
    key = jax.random.PRNGKey(0)
    # dim=64, num_heads=8 -> head_dim=8; N=13 deliberately exercises the key-padding path.
    B, N, C, H = 16, 13, 64, 8
    ks = jax.random.split(key, 6)
    x = jax.random.normal(ks[0], (B, N, C), jnp.float32)

    # PyTorch-layout parameters: nn.Linear weight is (out_features, in_features).
    raw = {
        "wq": 0.1 * jax.random.normal(ks[1], (C, C), jnp.float32),
        "wk": 0.1 * jax.random.normal(ks[2], (C, C), jnp.float32),
        "wv": 0.1 * jax.random.normal(ks[3], (C, C), jnp.float32),
        "wp": 0.1 * jax.random.normal(ks[4], (C, C), jnp.float32),
        "bp": 0.1 * jax.random.normal(ks[5], (C,), jnp.float32),
    }
    # Kernel layout: x @ W^T == x @ params["w*"]   (in_features, out_features)
    params = {"wq": raw["wq"].T, "wk": raw["wk"].T, "wv": raw["wv"].T,
              "wp": raw["wp"].T, "bp": raw["bp"]}

    fwd = jax.jit(distill_attention_forward,
                  static_argnames=("num_heads", "block_batch", "weight_buffers"))
    try:
        out = jax.block_until_ready(fwd(x, params, num_heads=H, weight_buffers=1))
    except Exception:
        # Safety net: if this JAX build rejects BlockSpec(pipeline_mode=pl.Buffered(1)),
        # fall back to default (double-buffered) resident weights — identical math.
        out = jax.block_until_ready(fwd(x, params, num_heads=H, weight_buffers=None))
    assert out.shape == (B, 1, C)

    ref = _ref_forward(x, raw, H)
    # bf16 MXU inputs with f32 accumulation -> compare against the f32 reference
    # with a bf16-appropriate tolerance.
    np.testing.assert_allclose(np.asarray(out), np.asarray(ref), rtol=5e-2, atol=5e-2)
    print("KERNEL_OK")
</pallas_src>

<mosaic_0001>
module attributes {stable_mosaic.version = 11 : i64} {
  func.func @_distill_attn_kernel(%arg0: i32, %arg1: memref<8x16x64xbf16, #tpu.memory_space<vmem>>, %arg2: memref<64x64xbf16, #tpu.memory_space<vmem>>, %arg3: memref<64x128xbf16, #tpu.memory_space<vmem>>, %arg4: memref<64x64xbf16, #tpu.memory_space<vmem>>, %arg5: memref<1x64xf32, #tpu.memory_space<vmem>>, %arg6: memref<64x8xf32, #tpu.memory_space<vmem>>, %arg7: memref<8x64xf32, #tpu.memory_space<vmem>>, %arg8: memref<16x8xf32, #tpu.memory_space<vmem>>, %arg9: memref<8x64xf32, #tpu.memory_space<vmem>>) attributes {dimension_semantics = [#tpu.dimension_semantics<parallel>], iteration_bounds = array<i64: 2>, scalar_prefetch = 0 : i64, scratch_operands = 0 : i64, tpu.core_type = #tpu.core_type<tc>, window_params = [{transform_indices = @transform_0, window_bounds = array<i64: 8, 16, 64>}, {pipeline_mode = #tpu.pipeline_mode<synchronous>, transform_indices = @transform_1, window_bounds = array<i64: 64, 64>}, {pipeline_mode = #tpu.pipeline_mode<synchronous>, transform_indices = @transform_2, window_bounds = array<i64: 64, 128>}, {pipeline_mode = #tpu.pipeline_mode<synchronous>, transform_indices = @transform_3, window_bounds = array<i64: 64, 64>}, {pipeline_mode = #tpu.pipeline_mode<synchronous>, transform_indices = @transform_4, window_bounds = array<i64: 1, 64>}, {pipeline_mode = #tpu.pipeline_mode<synchronous>, transform_indices = @transform_5, window_bounds = array<i64: 64, 8>}, {pipeline_mode = #tpu.pipeline_mode<synchronous>, transform_indices = @transform_6, window_bounds = array<i64: 8, 64>}, {pipeline_mode = #tpu.pipeline_mode<synchronous>, transform_indices = @transform_7, window_bounds = array<i64: 16, 8>}, {transform_indices = @transform_8, window_bounds = array<i64: 8, 64>}]} {
    %c0 = arith.constant 0 : index
    %c0_0 = arith.constant 0 : index
    %c0_1 = arith.constant 0 : index
    %0 = vector.load %arg1[%c0, %c0_0, %c0_1] : memref<8x16x64xbf16, #tpu.memory_space<vmem>>, vector<8x16x64xbf16>
    %1 = vector.shape_cast %0 : vector<8x16x64xbf16> to vector<128x64xbf16>
    %c0_2 = arith.constant 0 : index
    %c0_3 = arith.constant 0 : index
    %2 = vector.load %arg3[%c0_2, %c0_3] : memref<64x128xbf16, #tpu.memory_space<vmem>>, vector<64x128xbf16>
    %cst = arith.constant dense<0.000000e+00> : vector<128x128xf32>
    %3 = tpu.matmul %1, %2, %cst {dimension_numbers = #tpu.dot_dimension_numbers<[1], [0], [0], [1], [0, 0, 1, 1], [], []>} : vector<128x64xbf16>, vector<64x128xbf16>, vector<128x128xf32> -> vector<128x128xf32>
    %4 = vector.extract_strided_slice %3 {offsets = [0, 0], sizes = [128, 64], strides = [1, 1]} : vector<128x128xf32> to vector<128x64xf32>
    %5 = vector.shape_cast %4 : vector<128x64xf32> to vector<8x16x64xf32>
    %6 = vector.extract_strided_slice %3 {offsets = [0, 64], sizes = [128, 64], strides = [1, 1]} : vector<128x128xf32> to vector<128x64xf32>
    %7 = vector.shape_cast %6 : vector<128x64xf32> to vector<8x16x64xf32>
    %8 = vector.extract_strided_slice %0 {offsets = [0, 0, 0], sizes = [8, 1, 64], strides = [1, 1, 1]} : vector<8x16x64xbf16> to vector<8x1x64xbf16>
    %9 = vector.shape_cast %8 : vector<8x1x64xbf16> to vector<8x64xbf16>
    %c0_4 = arith.constant 0 : index
    %c0_5 = arith.constant 0 : index
    %10 = vector.load %arg2[%c0_4, %c0_5] : memref<64x64xbf16, #tpu.memory_space<vmem>>, vector<64x64xbf16>
    %cst_6 = arith.constant dense<0.000000e+00> : vector<8x64xf32>
    %11 = tpu.matmul %9, %10, %cst_6 {dimension_numbers = #tpu.dot_dimension_numbers<[1], [0], [0], [1], [0, 0, 1, 1], [], []>} : vector<8x64xbf16>, vector<64x64xbf16>, vector<8x64xf32> -> vector<8x64xf32>
    %12 = vector.shape_cast %11 : vector<8x64xf32> to vector<8x1x64xf32>
    %13 = vector.broadcast %12 : vector<8x1x64xf32> to vector<8x16x64xf32>
    %14 = arith.mulf %5, %13 : vector<8x16x64xf32>
    %15 = vector.shape_cast %14 : vector<8x16x64xf32> to vector<128x64xf32>
    %c0_7 = arith.constant 0 : index
    %c0_8 = arith.constant 0 : index
    %16 = vector.load %arg6[%c0_7, %c0_8] : memref<64x8xf32, #tpu.memory_space<vmem>>, vector<64x8xf32>
    %cst_9 = arith.constant dense<0.000000e+00> : vector<128x8xf32>
    %17 = tpu.matmul %15, %16, %cst_9 {dimension_numbers = #tpu.dot_dimension_numbers<[1], [0], [0], [1], [0, 0, 1, 1], [], []>} : vector<128x64xf32>, vector<64x8xf32>, vector<128x8xf32> -> vector<128x8xf32>
    %18 = vector.shape_cast %17 : vector<128x8xf32> to vector<8x16x8xf32>
    %c0_10 = arith.constant 0 : index
    %c0_11 = arith.constant 0 : index
    %19 = vector.load %arg8[%c0_10, %c0_11] : memref<16x8xf32, #tpu.memory_space<vmem>>, vector<16x8xf32>
    %20 = vector.shape_cast %19 : vector<16x8xf32> to vector<1x16x8xf32>
    %21 = vector.broadcast %20 : vector<1x16x8xf32> to vector<8x16x8xf32>
    %22 = arith.addf %18, %21 : vector<8x16x8xf32>
    %cst_12 = arith.constant dense<0xFF800000> : vector<8x8xf32>
    %23 = vector.multi_reduction <maximumf>, %22, %cst_12 [1] : vector<8x16x8xf32> to vector<8x8xf32>
    %24 = vector.shape_cast %23 : vector<8x8xf32> to vector<8x1x8xf32>
    %25 = vector.broadcast %24 : vector<8x1x8xf32> to vector<8x16x8xf32>
    %26 = arith.subf %22, %25 : vector<8x16x8xf32>
    %27 = math.exp %26 : vector<8x16x8xf32>
    %cst_13 = arith.constant dense<0.000000e+00> : vector<8x8xf32>
    %28 = vector.multi_reduction <add>, %27, %cst_13 [1] : vector<8x16x8xf32> to vector<8x8xf32>
    %29 = vector.shape_cast %28 : vector<8x8xf32> to vector<8x1x8xf32>
    %30 = tpu.reciprocal %29 {approx = true} : vector<8x1x8xf32> -> vector<8x1x8xf32>
    %31 = vector.broadcast %30 : vector<8x1x8xf32> to vector<8x16x8xf32>
    %32 = arith.mulf %27, %31 : vector<8x16x8xf32>
    %33 = vector.shape_cast %32 : vector<8x16x8xf32> to vector<128x8xf32>
    %c0_14 = arith.constant 0 : index
    %c0_15 = arith.constant 0 : index
    %34 = vector.load %arg7[%c0_14, %c0_15] : memref<8x64xf32, #tpu.memory_space<vmem>>, vector<8x64xf32>
    %cst_16 = arith.constant dense<0.000000e+00> : vector<128x64xf32>
    %35 = tpu.matmul %33, %34, %cst_16 {dimension_numbers = #tpu.dot_dimension_numbers<[1], [0], [0], [1], [0, 0, 1, 1], [], []>} : vector<128x8xf32>, vector<8x64xf32>, vector<128x64xf32> -> vector<128x64xf32>
    %36 = vector.shape_cast %35 : vector<128x64xf32> to vector<8x16x64xf32>
    %37 = arith.mulf %36, %7 : vector<8x16x64xf32>
    %cst_17 = arith.constant dense<0.000000e+00> : vector<8x64xf32>
    %38 = vector.multi_reduction <add>, %37, %cst_17 [1] : vector<8x16x64xf32> to vector<8x64xf32>
    %39 = arith.truncf %38 : vector<8x64xf32> to vector<8x64xbf16>
    %c0_18 = arith.constant 0 : index
    %c0_19 = arith.constant 0 : index
    %40 = vector.load %arg4[%c0_18, %c0_19] : memref<64x64xbf16, #tpu.memory_space<vmem>>, vector<64x64xbf16>
    %cst_20 = arith.constant dense<0.000000e+00> : vector<8x64xf32>
    %41 = tpu.matmul %39, %40, %cst_20 {dimension_numbers = #tpu.dot_dimension_numbers<[1], [0], [0], [1], [0, 0, 1, 1], [], []>} : vector<8x64xbf16>, vector<64x64xbf16>, vector<8x64xf32> -> vector<8x64xf32>
    %c0_21 = arith.constant 0 : index
    %c0_22 = arith.constant 0 : index
    %42 = vector.load %arg5[%c0_21, %c0_22] : memref<1x64xf32, #tpu.memory_space<vmem>>, vector<1x64xf32>
    %43 = vector.broadcast %42 : vector<1x64xf32> to vector<8x64xf32>
    %44 = arith.addf %41, %43 : vector<8x64xf32>
    %c0_23 = arith.constant 0 : index
    %c0_24 = arith.constant 0 : index
    %45 = vector.load %arg9[%c0_23, %c0_24] : memref<8x64xf32, #tpu.memory_space<vmem>>, vector<8x64xf32>
    tpu.vector_store %arg9[%c0_23, %c0_24], %44 {strides = array<i32>} : memref<8x64xf32, #tpu.memory_space<vmem>>, vector<8x64xf32>,
    return
  }
  func.func @transform_0(%arg0: i32) -> (i32, i32, i32) {
    %c0_i32 = arith.constant 0 : i32
    %c0_i32_0 = arith.constant 0 : i32
    %c0_i32_1 = arith.constant 0 : i32
    return %arg0, %c0_i32, %c0_i32_0 : i32, i32, i32
  }
  func.func @transform_1(%arg0: i32) -> (i32, i32) {
    %c0_i32 = arith.constant 0 : i32
    %c0_i32_0 = arith.constant 0 : i32
    %c0_i32_1 = arith.constant 0 : i32
    return %c0_i32, %c0_i32_0 : i32, i32
  }
  func.func @transform_2(%arg0: i32) -> (i32, i32) {
    %c0_i32 = arith.constant 0 : i32
    %c0_i32_0 = arith.constant 0 : i32
    %c0_i32_1 = arith.constant 0 : i32
    return %c0_i32, %c0_i32_0 : i32, i32
  }
  func.func @transform_3(%arg0: i32) -> (i32, i32) {
    %c0_i32 = arith.constant 0 : i32
    %c0_i32_0 = arith.constant 0 : i32
    %c0_i32_1 = arith.constant 0 : i32
    return %c0_i32, %c0_i32_0 : i32, i32
  }
  func.func @transform_4(%arg0: i32) -> (i32, i32) {
    %c0_i32 = arith.constant 0 : i32
    %c0_i32_0 = arith.constant 0 : i32
    %c0_i32_1 = arith.constant 0 : i32
    return %c0_i32, %c0_i32_0 : i32, i32
  }
  func.func @transform_5(%arg0: i32) -> (i32, i32) {
    %c0_i32 = arith.constant 0 : i32
    %c0_i32_0 = arith.constant 0 : i32
    %c0_i32_1 = arith.constant 0 : i32
    return %c0_i32, %c0_i32_0 : i32, i32
  }
  func.func @transform_6(%arg0: i32) -> (i32, i32) {
    %c0_i32 = arith.constant 0 : i32
    %c0_i32_0 = arith.constant 0 : i32
    %c0_i32_1 = arith.constant 0 : i32
    return %c0_i32, %c0_i32_0 : i32, i32
  }
  func.func @transform_7(%arg0: i32) -> (i32, i32) {
    %c0_i32 = arith.constant 0 : i32
    %c0_i32_0 = arith.constant 0 : i32
    %c0_i32_1 = arith.constant 0 : i32
    return %c0_i32, %c0_i32_0 : i32, i32
  }
  func.func @transform_8(%arg0: i32) -> (i32, i32) {
    %c0_i32 = arith.constant 0 : i32
    %c0_i32_0 = arith.constant 0 : i32
    return %arg0, %c0_i32 : i32, i32
  }
}

module attributes {stable_mosaic.version = 11 : i64} {
  func.func @_distill_attn_kernel(%arg0: i32, %arg1: memref<8x16x64xbf16, #tpu.memory_space<vmem>>, %arg2: memref<64x64xbf16, #tpu.memory_space<vmem>>, %arg3: memref<64x128xbf16, #tpu.memory_space<vmem>>, %arg4: memref<64x64xbf16, #tpu.memory_space<vmem>>, %arg5: memref<1x64xf32, #tpu.memory_space<vmem>>, %arg6: memref<64x8xf32, #tpu.memory_space<vmem>>, %arg7: memref<8x64xf32, #tpu.memory_space<vmem>>, %arg8: memref<16x8xf32, #tpu.memory_space<vmem>>, %arg9: memref<8x64xf32, #tpu.memory_space<vmem>>) attributes {dimension_semantics = [#tpu.dimension_semantics<parallel>], iteration_bounds = array<i64: 2>, scalar_prefetch = 0 : i64, scratch_operands = 0 : i64, tpu.core_type = #tpu.core_type<tc>, window_params = [{transform_indices = @transform_0, window_bounds = array<i64: 8, 16, 64>}, {pipeline_mode = #tpu.pipeline_mode<synchronous>, transform_indices = @transform_1, window_bounds = array<i64: 64, 64>}, {pipeline_mode = #tpu.pipeline_mode<synchronous>, transform_indices = @transform_2, window_bounds = array<i64: 64, 128>}, {pipeline_mode = #tpu.pipeline_mode<synchronous>, transform_indices = @transform_3, window_bounds = array<i64: 64, 64>}, {pipeline_mode = #tpu.pipeline_mode<synchronous>, transform_indices = @transform_4, window_bounds = array<i64: 1, 64>}, {pipeline_mode = #tpu.pipeline_mode<synchronous>, transform_indices = @transform_5, window_bounds = array<i64: 64, 8>}, {pipeline_mode = #tpu.pipeline_mode<synchronous>, transform_indices = @transform_6, window_bounds = array<i64: 8, 64>}, {pipeline_mode = #tpu.pipeline_mode<synchronous>, transform_indices = @transform_7, window_bounds = array<i64: 16, 8>}, {transform_indices = @transform_8, window_bounds = array<i64: 8, 64>}]} {
    %c0 = arith.constant 0 : index
    %c0_0 = arith.constant 0 : index
    %c0_1 = arith.constant 0 : index
    %0 = vector.load %arg1[%c0, %c0_0, %c0_1] : memref<8x16x64xbf16, #tpu.memory_space<vmem>>, vector<8x16x64xbf16>
    %1 = vector.shape_cast %0 : vector<8x16x64xbf16> to vector<128x64xbf16>
    %c0_2 = arith.constant 0 : index
    %c0_3 = arith.constant 0 : index
    %2 = vector.load %arg3[%c0_2, %c0_3] : memref<64x128xbf16, #tpu.memory_space<vmem>>, vector<64x128xbf16>
    %cst = arith.constant dense<0.000000e+00> : vector<128x128xf32>
    %3 = tpu.matmul %1, %2, %cst {dimension_numbers = #tpu.dot_dimension_numbers<[1], [0], [0], [1], [0, 0, 1, 1], [], []>} : vector<128x64xbf16>, vector<64x128xbf16>, vector<128x128xf32> -> vector<128x128xf32>
    %4 = vector.extract_strided_slice %3 {offsets = [0, 0], sizes = [128, 64], strides = [1, 1]} : vector<128x128xf32> to vector<128x64xf32>
    %5 = vector.shape_cast %4 : vector<128x64xf32> to vector<8x16x64xf32>
    %6 = vector.extract_strided_slice %3 {offsets = [0, 64], sizes = [128, 64], strides = [1, 1]} : vector<128x128xf32> to vector<128x64xf32>
    %7 = vector.shape_cast %6 : vector<128x64xf32> to vector<8x16x64xf32>
    %8 = vector.extract_strided_slice %0 {offsets = [0, 0, 0], sizes = [8, 1, 64], strides = [1, 1, 1]} : vector<8x16x64xbf16> to vector<8x1x64xbf16>
    %9 = vector.shape_cast %8 : vector<8x1x64xbf16> to vector<8x64xbf16>
    %c0_4 = arith.constant 0 : index
    %c0_5 = arith.constant 0 : index
    %10 = vector.load %arg2[%c0_4, %c0_5] : memref<64x64xbf16, #tpu.memory_space<vmem>>, vector<64x64xbf16>
    %cst_6 = arith.constant dense<0.000000e+00> : vector<8x64xf32>
    %11 = tpu.matmul %9, %10, %cst_6 {dimension_numbers = #tpu.dot_dimension_numbers<[1], [0], [0], [1], [0, 0, 1, 1], [], []>} : vector<8x64xbf16>, vector<64x64xbf16>, vector<8x64xf32> -> vector<8x64xf32>
    %12 = vector.shape_cast %11 : vector<8x64xf32> to vector<8x1x64xf32>
    %13 = vector.broadcast %12 : vector<8x1x64xf32> to vector<8x16x64xf32>
    %14 = arith.mulf %5, %13 : vector<8x16x64xf32>
    %15 = vector.shape_cast %14 : vector<8x16x64xf32> to vector<128x64xf32>
    %c0_7 = arith.constant 0 : index
    %c0_8 = arith.constant 0 : index
    %16 = vector.load %arg6[%c0_7, %c0_8] : memref<64x8xf32, #tpu.memory_space<vmem>>, vector<64x8xf32>
    %cst_9 = arith.constant dense<0.000000e+00> : vector<128x8xf32>
    %17 = tpu.matmul %15, %16, %cst_9 {dimension_numbers = #tpu.dot_dimension_numbers<[1], [0], [0], [1], [0, 0, 1, 1], [], []>} : vector<128x64xf32>, vector<64x8xf32>, vector<128x8xf32> -> vector<128x8xf32>
    %18 = vector.shape_cast %17 : vector<128x8xf32> to vector<8x16x8xf32>
    %c0_10 = arith.constant 0 : index
    %c0_11 = arith.constant 0 : index
    %19 = vector.load %arg8[%c0_10, %c0_11] : memref<16x8xf32, #tpu.memory_space<vmem>>, vector<16x8xf32>
    %20 = vector.shape_cast %19 : vector<16x8xf32> to vector<1x16x8xf32>
    %21 = vector.broadcast %20 : vector<1x16x8xf32> to vector<8x16x8xf32>
    %22 = arith.addf %18, %21 : vector<8x16x8xf32>
    %cst_12 = arith.constant dense<0xFF800000> : vector<8x8xf32>
    %23 = vector.multi_reduction <maximumf>, %22, %cst_12 [1] : vector<8x16x8xf32> to vector<8x8xf32>
    %24 = vector.shape_cast %23 : vector<8x8xf32> to vector<8x1x8xf32>
    %25 = vector.broadcast %24 : vector<8x1x8xf32> to vector<8x16x8xf32>
    %26 = arith.subf %22, %25 : vector<8x16x8xf32>
    %27 = math.exp %26 : vector<8x16x8xf32>
    %cst_13 = arith.constant dense<0.000000e+00> : vector<8x8xf32>
    %28 = vector.multi_reduction <add>, %27, %cst_13 [1] : vector<8x16x8xf32> to vector<8x8xf32>
    %29 = vector.shape_cast %28 : vector<8x8xf32> to vector<8x1x8xf32>
    %30 = tpu.reciprocal %29 {approx = true} : vector<8x1x8xf32> -> vector<8x1x8xf32>
    %31 = vector.broadcast %30 : vector<8x1x8xf32> to vector<8x16x8xf32>
    %32 = arith.mulf %27, %31 : vector<8x16x8xf32>
    %33 = vector.shape_cast %32 : vector<8x16x8xf32> to vector<128x8xf32>
    %c0_14 = arith.constant 0 : index
    %c0_15 = arith.constant 0 : index
    %34 = vector.load %arg7[%c0_14, %c0_15] : memref<8x64xf32, #tpu.memory_space<vmem>>, vector<8x64xf32>
    %cst_16 = arith.constant dense<0.000000e+00> : vector<128x64xf32>
    %35 = tpu.matmul %33, %34, %cst_16 {dimension_numbers = #tpu.dot_dimension_numbers<[1], [0], [0], [1], [0, 0, 1, 1], [], []>} : vector<128x8xf32>, vector<8x64xf32>, vector<128x64xf32> -> vector<128x64xf32>
    %36 = vector.shape_cast %35 : vector<128x64xf32> to vector<8x16x64xf32>
    %37 = arith.mulf %36, %7 : vector<8x16x64xf32>
    %cst_17 = arith.constant dense<0.000000e+00> : vector<8x64xf32>
    %38 = vector.multi_reduction <add>, %37, %cst_17 [1] : vector<8x16x64xf32> to vector<8x64xf32>
    %39 = arith.truncf %38 : vector<8x64xf32> to vector<8x64xbf16>
    %c0_18 = arith.constant 0 : index
    %c0_19 = arith.constant 0 : index
    %40 = vector.load %arg4[%c0_18, %c0_19] : memref<64x64xbf16, #tpu.memory_space<vmem>>, vector<64x64xbf16>
    %cst_20 = arith.constant dense<0.000000e+00> : vector<8x64xf32>
    %41 = tpu.matmul %39, %40, %cst_20 {dimension_numbers = #tpu.dot_dimension_numbers<[1], [0], [0], [1], [0, 0, 1, 1], [], []>} : vector<8x64xbf16>, vector<64x64xbf16>, vector<8x64xf32> -> vector<8x64xf32>
    %c0_21 = arith.constant 0 : index
    %c0_22 = arith.constant 0 : index
    %42 = vector.load %arg5[%c0_21, %c0_22] : memref<1x64xf32, #tpu.memory_space<vmem>>, vector<1x64xf32>
    %43 = vector.broadcast %42 : vector<1x64xf32> to vector<8x64xf32>
    %44 = arith.addf %41, %43 : vector<8x64xf32>
    %c0_23 = arith.constant 0 : index
    %c0_24 = arith.constant 0 : index
    %45 = vector.load %arg9[%c0_23, %c0_24] : memref<8x64xf32, #tpu.memory_space<vmem>>, vector<8x64xf32>
    tpu.vector_store %arg9[%c0_23, %c0_24], %44 {strides = array<i32>} : memref<8x64xf32, #tpu.memory_space<vmem>>, vector<8x64xf32>,
    return
  }
  func.func @transform_0(%arg0: i32) -> (i32, i32, i32) {
    %c0_i32 = arith.constant 0 : i32
    %c0_i32_0 = arith.constant 0 : i32
    %c0_i32_1 = arith.constant 0 : i32
    return %arg0, %c0_i32, %c0_i32_0 : i32, i32, i32
  }
  func.func @transform_1(%arg0: i32) -> (i32, i32) {
    %c0_i32 = arith.constant 0 : i32
    %c0_i32_0 = arith.constant 0 : i32
    %c0_i32_1 = arith.constant 0 : i32
    return %c0_i32, %c0_i32_0 : i32, i32
  }
  func.func @transform_2(%arg0: i32) -> (i32, i32) {
    %c0_i32 = arith.constant 0 : i32
    %c0_i32_0 = arith.constant 0 : i32
    %c0_i32_1 = arith.constant 0 : i32
    return %c0_i32, %c0_i32_0 : i32, i32
  }
  func.func @transform_3(%arg0: i32) -> (i32, i32) {
    %c0_i32 = arith.constant 0 : i32
    %c0_i32_0 = arith.constant 0 : i32
    %c0_i32_1 = arith.constant 0 : i32
    return %c0_i32, %c0_i32_0 : i32, i32
  }
  func.func @transform_4(%arg0: i32) -> (i32, i32) {
    %c0_i32 = arith.constant 0 : i32
    %c0_i32_0 = arith.constant 0 : i32
    %c0_i32_1 = arith.constant 0 : i32
    return %c0_i32, %c0_i32_0 : i32, i32
  }
  func.func @transform_5(%arg0: i32) -> (i32, i32) {
    %c0_i32 = arith.constant 0 : i32
    %c0_i32_0 = arith.constant 0 : i32
    %c0_i32_1 = arith.constant 0 : i32
    return %c0_i32, %c0_i32_0 : i32, i32
  }
  func.func @transform_6(%arg0: i32) -> (i32, i32) {
    %c0_i32 = arith.constant 0 : i32
    %c0_i32_0 = arith.constant 0 : i32
    %c0_i32_1 = arith.constant 0 : i32
    return %c0_i32, %c0_i32_0 : i32, i32
  }
  func.func @transform_7(%arg0: i32) -> (i32, i32) {
    %c0_i32 = arith.constant 0 : i32
    %c0_i32_0 = arith.constant 0 : i32
    %c0_i32_1 = arith.constant 0 : i32
    return %c0_i32, %c0_i32_0 : i32, i32
  }
  func.func @transform_8(%arg0: i32) -> (i32, i32) {
    %c0_i32 = arith.constant 0 : i32
    %c0_i32_0 = arith.constant 0 : i32
    return %arg0, %c0_i32 : i32, i32
  }
}

</mosaic_0001>

<llo_original>
// kernel: distill_attention_forward.1
$region0: #{distill_attention_forward.1}
  #allocation0 [shape = 'u32[]', space=smem, size = 0x4, offset = 0x4, fixed_abs, tag = 'smem constant byte address 0x4 - core index']
  #allocation1 [shape = 'u32[72,128]{1,0:T(1,128)}', space=vmem, size = 0x9000, scoped, tag = 'internal scratch']
  %s0 = inlined_call_operand.vmem [shape: bf16[16,16,64], index: 0, kind: input, shape index: {}]
  %s1 = inlined_call_operand.vmem [shape: bf16[64,64], index: 1, kind: input, shape index: {}]
  %s2 = inlined_call_operand.vmem [shape: bf16[64,128], index: 2, kind: input, shape index: {}]
  %s3 = inlined_call_operand.vmem [shape: bf16[64,64], index: 3, kind: input, shape index: {}]
  %s4 = inlined_call_operand.vmem [shape: f32[1,64], index: 4, kind: input, shape index: {}]
  %s5 = inlined_call_operand.vmem [shape: f32[64,8], index: 5, kind: input, shape index: {}]
  %s6 = inlined_call_operand.vmem [shape: f32[8,64], index: 6, kind: input, shape index: {}]
  %s7 = inlined_call_operand.vmem [shape: f32[16,8], index: 7, kind: input, shape index: {}]
  %s8 = inlined_call_operand.hbm [shape: f32[16,64], index: 8, kind: output, shape index: {}]
  %s9 = sld [smem:[#allocation0]]
  $region65: #{distill_attention_forward.1} parent=0
    _
  %s11 = ssub.s32 1, %s9
  %s12 = scalar_select 0, %s11, %s9
  $region1: #{distill_attention_forward.1} parent=0
    #allocation2 [shape = 'u8[8192]{0}', space=vmem, size = 0x2000, scoped, tag = 'output window, operand 0']
    #allocation3 [shape = 's32[2]{0}', space=sflag, size = 0x8, scoped, tag = 'scoped memory for distill_attention_forward.1']
    %13 = vsyncpa [#allocation3], 0
    %s14 = scalar_lea.sflag [#allocation3], 1
    %15 = vsyncpa %s14, 0
    loop: start=0, step=1, limit=4
    $region2: #{distill_attention_forward.1} parent=1 // loop_pre_header
      _
    $region3: #{distill_attention_forward.1} parent=1 // loop_header
      %s17 = sphi 0, %s21
      %p18 = scmp.ge.s32.totalorder %s17, 4
      %s27 = sphi 0, %s29
      %s30 = sphi 0, %s27
      %s31 = sphi 0, %s30
      %s47 = sphi 0, %s31
      %s51 = sphi 0, %s51
      %s53 = sphi 0, %s51
      %s54 = sphi 0, %s53
      %s68 = sphi 0, %s54
      %s72 = sphi 0, %s72
      %s74 = sphi 0, %s72
      %s75 = sphi 0, %s74
      %s89 = sphi 0, %s75
      %s93 = sphi 0, %s93
      %s95 = sphi 0, %s93
      %s96 = sphi 0, %s95
      %s110 = sphi 0, %s96
      %s114 = sphi 0, %s114
      %s116 = sphi 0, %s114
      %s117 = sphi 0, %s116
      %s131 = sphi 0, %s117
      %s135 = sphi 0, %s135
      %s137 = sphi 0, %s135
      %s138 = sphi 0, %s137
      %s152 = sphi 0, %s138
      %s156 = sphi 0, %s156
      %s158 = sphi 0, %s156
      %s159 = sphi 0, %s158
      %s173 = sphi 0, %s159
      %s177 = sphi 0, %s177
      %s179 = sphi 0, %s177
      %s180 = sphi 0, %s179
      %s194 = sphi 0, %s180
      %s200 = sphi 0, %s202
      %s203 = sphi 0, %s200
      %s204 = sphi 0, %s203
      %s220 = sphi 0, %s204
    $region4: #{distill_attention_forward.1} parent=1 // loop_header_branch
      %20 = sbr.rel (%p18) target = $region8
    $region5: #{distill_attention_forward.1} parent=1 // loop_body
      %s22 = ssub.s32 %s17, 1
      %s23 = ssub.s32 %s17, 2
      %s24 = sadd.s32 %s17, 1
      %s25 = ssub.s32 %s17, %s24
      %p26 = scmp.eq.s32.totalorder %s25, 0
      %s28 = sadd.s32 %s27, 1
      %s29 = scalar_select %p26, %s27, %s28
      %p32 = pneg %p26
      %p33 = scmp.eq.s32.totalorder %s17, 1
      %p34 = por %p32, %p33
      %p35 = scmp.ne.s32.totalorder %s27, %s30
      %p36 = scmp.eq.s32.totalorder %s17, 0
      %p37 = por %p35, %p36
      %p38 = scmp.ne.s32.totalorder %s27, %s30
      %p39 = scmp.eq.s32.totalorder %s22, 1
      %p40 = por %p38, %p39
      %p41 = scmp.ne.s32.totalorder %s30, %s31
      %p42 = scmp.eq.s32.totalorder %s22, 0
      %p43 = por %p41, %p42
      %p44 = scmp.ne.s32.totalorder %s30, %s31
      %p45 = scmp.eq.s32.totalorder %s23, 1
      %p46 = por %p44, %p45
      %p48 = scmp.ne.s32.totalorder %s31, %s47
      %p49 = scmp.eq.s32.totalorder %s23, 0
      %p50 = por %p48, %p49
      %s52 = sadd.s32 %s51, 1
      %p55 = scmp.eq.s32.totalorder %s17, 1
      %p56 = scmp.ne.s32.totalorder %s51, %s53
      %p57 = scmp.eq.s32.totalorder %s17, 0
      %p58 = por %p56, %p57
      %p59 = scmp.ne.s32.totalorder %s51, %s53
      %p60 = scmp.eq.s32.totalorder %s22, 1
      %p61 = por %p59, %p60
      %p62 = scmp.ne.s32.totalorder %s53, %s54
      %p63 = scmp.eq.s32.totalorder %s22, 0
      %p64 = por %p62, %p63
      %p65 = scmp.ne.s32.totalorder %s53, %s54
      %p66 = scmp.eq.s32.totalorder %s23, 1
      %p67 = por %p65, %p66
      %p69 = scmp.ne.s32.totalorder %s54, %s68
      %p70 = scmp.eq.s32.totalorder %s23, 0
      %p71 = por %p69, %p70
      %s73 = sadd.s32 %s72, 1
      %p76 = scmp.eq.s32.totalorder %s17, 1
      %p77 = scmp.ne.s32.totalorder %s72, %s74
      %p78 = scmp.eq.s32.totalorder %s17, 0
      %p79 = por %p77, %p78
      %p80 = scmp.ne.s32.totalorder %s72, %s74
      %p81 = scmp.eq.s32.totalorder %s22, 1
      %p82 = por %p80, %p81
      %p83 = scmp.ne.s32.totalorder %s74, %s75
      %p84 = scmp.eq.s32.totalorder %s22, 0
      %p85 = por %p83, %p84
      %p86 = scmp.ne.s32.totalorder %s74, %s75
      %p87 = scmp.eq.s32.totalorder %s23, 1
      %p88 = por %p86, %p87
      %p90 = scmp.ne.s32.totalorder %s75, %s89
      %p91 = scmp.eq.s32.totalorder %s23, 0
      %p92 = por %p90, %p91
      %s94 = sadd.s32 %s93, 1
      %p97 = scmp.eq.s32.totalorder %s17, 1
      %p98 = scmp.ne.s32.totalorder %s93, %s95
      %p99 = scmp.eq.s32.totalorder %s17, 0
      %p100 = por %p98, %p99
      %p101 = scmp.ne.s32.totalorder %s93, %s95
      %p102 = scmp.eq.s32.totalorder %s22, 1
      %p103 = por %p101, %p102
      %p104 = scmp.ne.s32.totalorder %s95, %s96
      %p105 = scmp.eq.s32.totalorder %s22, 0
      %p106 = por %p104, %p105
      %p107 = scmp.ne.s32.totalorder %s95, %s96
      %p108 = scmp.eq.s32.totalorder %s23, 1
      %p109 = por %p107, %p108
      %p111 = scmp.ne.s32.totalorder %s96, %s110
      %p112 = scmp.eq.s32.totalorder %s23, 0
      %p113 = por %p111, %p112
      %s115 = sadd.s32 %s114, 1
      %p118 = scmp.eq.s32.totalorder %s17, 1
      %p119 = scmp.ne.s32.totalorder %s114, %s116
      %p120 = scmp.eq.s32.totalorder %s17, 0
      %p121 = por %p119, %p120
      %p122 = scmp.ne.s32.totalorder %s114, %s116
      %p123 = scmp.eq.s32.totalorder %s22, 1
      %p124 = por %p122, %p123
      %p125 = scmp.ne.s32.totalorder %s116, %s117
      %p126 = scmp.eq.s32.totalorder %s22, 0
      %p127 = por %p125, %p126
      %p128 = scmp.ne.s32.totalorder %s116, %s117
      %p129 = scmp.eq.s32.totalorder %s23, 1
      %p130 = por %p128, %p129
      %p132 = scmp.ne.s32.totalorder %s117, %s131
      %p133 = scmp.eq.s32.totalorder %s23, 0
      %p134 = por %p132, %p133
      %s136 = sadd.s32 %s135, 1
      %p139 = scmp.eq.s32.totalorder %s17, 1
      %p140 = scmp.ne.s32.totalorder %s135, %s137
      %p141 = scmp.eq.s32.totalorder %s17, 0
      %p142 = por %p140, %p141
      %p143 = scmp.ne.s32.totalorder %s135, %s137
      %p144 = scmp.eq.s32.totalorder %s22, 1
      %p145 = por %p143, %p144
      %p146 = scmp.ne.s32.totalorder %s137, %s138
      %p147 = scmp.eq.s32.totalorder %s22, 0
      %p148 = por %p146, %p147
      %p149 = scmp.ne.s32.totalorder %s137, %s138
      %p150 = scmp.eq.s32.totalorder %s23, 1
      %p151 = por %p149, %p150
      %p153 = scmp.ne.s32.totalorder %s138, %s152
      %p154 = scmp.eq.s32.totalorder %s23, 0
      %p155 = por %p153, %p154
      %s157 = sadd.s32 %s156, 1
      %p160 = scmp.eq.s32.totalorder %s17, 1
      %p161 = scmp.ne.s32.totalorder %s156, %s158
      %p162 = scmp.eq.s32.totalorder %s17, 0
      %p163 = por %p161, %p162
      %p164 = scmp.ne.s32.totalorder %s156, %s158
      %p165 = scmp.eq.s32.totalorder %s22, 1
      %p166 = por %p164, %p165
      %p167 = scmp.ne.s32.totalorder %s158, %s159
      %p168 = scmp.eq.s32.totalorder %s22, 0
      %p169 = por %p167, %p168
      %p170 = scmp.ne.s32.totalorder %s158, %s159
      %p171 = scmp.eq.s32.totalorder %s23, 1
      %p172 = por %p170, %p171
      %p174 = scmp.ne.s32.totalorder %s159, %s173
      %p175 = scmp.eq.s32.totalorder %s23, 0
      %p176 = por %p174, %p175
      %s178 = sadd.s32 %s177, 1
      %p181 = scmp.eq.s32.totalorder %s17, 1
      %p182 = scmp.ne.s32.totalorder %s177, %s179
      %p183 = scmp.eq.s32.totalorder %s17, 0
      %p184 = por %p182, %p183
      %p185 = scmp.ne.s32.totalorder %s177, %s179
      %p186 = scmp.eq.s32.totalorder %s22, 1
      %p187 = por %p185, %p186
      %p188 = scmp.ne.s32.totalorder %s179, %s180
      %p189 = scmp.eq.s32.totalorder %s22, 0
      %p190 = por %p188, %p189
      %p191 = scmp.ne.s32.totalorder %s179, %s180
      %p192 = scmp.eq.s32.totalorder %s23, 1
      %p193 = por %p191, %p192
      %p195 = scmp.ne.s32.totalorder %s180, %s194
      %p196 = scmp.eq.s32.totalorder %s23, 0
      %p197 = por %p195, %p196
      %s198 = ssub.s32 %s17, %s24
      %p199 = scmp.eq.s32.totalorder %s198, 0
      %s201 = sadd.s32 %s200, 1
      %s202 = scalar_select %p199, %s200, %s201
      %p205 = pneg %p199
      %p206 = scmp.eq.s32.totalorder %s17, 1
      %p207 = por %p205, %p206
      %p208 = scmp.ne.s32.totalorder %s200, %s203
      %p209 = scmp.eq.s32.totalorder %s17, 0
      %p210 = por %p208, %p209
      %p211 = scmp.ne.s32.totalorder %s200, %s203
      %p212 = scmp.eq.s32.totalorder %s22, 1
      %p213 = por %p211, %p212
      %p214 = scmp.ne.s32.totalorder %s203, %s204
      %p215 = scmp.eq.s32.totalorder %s22, 0
      %p216 = por %p214, %p215
      %p217 = scmp.ne.s32.totalorder %s203, %s204
      %p218 = scmp.eq.s32.totalorder %s23, 1
      %p219 = por %p217, %p218
      %p221 = scmp.ne.s32.totalorder %s204, %s220
      %p222 = scmp.eq.s32.totalorder %s23, 0
      %p223 = por %p221, %p222
      %p224 = scmp.le.s32.totalorder 1, %s17
      %p225 = scmp.lt.s32.totalorder %s17, 3
      %p226 = pnand %p224, %p225
      %p227 = pneg %p226
      // Predicated region
      $region9: #{distill_attention_forward.1} parent=5 // pred_check
        _
      $region10: #{distill_attention_forward.1} parent=5 // pred_check_branch
        %229 = sbr.rel (%p226) target = $region12
      $region11: #{distill_attention_forward.1} parent=5 // pred_region
        %s230 = ssub.s32 %s17, 1
        // Predicated region
        $region13: #{distill_attention_forward.1} parent=11 // pred_check
          %p231 = pneg %p64
        $region14: #{distill_attention_forward.1} parent=11 // pred_check_branch
          %233 = sbr.rel (%p231) target = $region16
        $region15: #{distill_attention_forward.1} parent=11 // pred_region
          _
        $region16: #{distill_attention_forward.1} parent=11 // pred_fallthru
          _
        // Predicated region
        $region17: #{distill_attention_forward.1} parent=11 // pred_check
          %p234 = pneg %p85
        $region18: #{distill_attention_forward.1} parent=11 // pred_check_branch
          %236 = sbr.rel (%p234) target = $region20
        $region19: #{distill_attention_forward.1} parent=11 // pred_region
          _
        $region20: #{distill_attention_forward.1} parent=11 // pred_fallthru
          _
        // Predicated region
        $region21: #{distill_attention_forward.1} parent=11 // pred_check
          %p237 = pneg %p106
        $region22: #{distill_attention_forward.1} parent=11 // pred_check_branch
          %239 = sbr.rel (%p237) target = $region24
        $region23: #{distill_attention_forward.1} parent=11 // pred_region
          _
        $region24: #{distill_attention_forward.1} parent=11 // pred_fallthru
          _
        // Predicated region
        $region25: #{distill_attention_forward.1} parent=11 // pred_check
          %p240 = pneg %p127
        $region26: #{distill_attention_forward.1} parent=11 // pred_check_branch
          %242 = sbr.rel (%p240) target = $region28
        $region27: #{distill_attention_forward.1} parent=11 // pred_region
          _
        $region28: #{distill_attention_forward.1} parent=11 // pred_fallthru
          _
        // Predicated region
        $region29: #{distill_attention_forward.1} parent=11 // pred_check
          %p243 = pneg %p148
        $region30: #{distill_attention_forward.1} parent=11 // pred_check_branch
          %245 = sbr.rel (%p243) target = $region32
        $region31: #{distill_attention_forward.1} parent=11 // pred_region
          _
        $region32: #{distill_attention_forward.1} parent=11 // pred_fallthru
          _
        // Predicated region
        $region33: #{distill_attention_forward.1} parent=11 // pred_check
          %p246 = pneg %p169
        $region34: #{distill_attention_forward.1} parent=11 // pred_check_branch
          %248 = sbr.rel (%p246) target = $region36
        $region35: #{distill_attention_forward.1} parent=11 // pred_region
          _
        $region36: #{distill_attention_forward.1} parent=11 // pred_fallthru
          _
        // Predicated region
        $region37: #{distill_attention_forward.1} parent=11 // pred_check
          %p249 = pneg %p190
        $region38: #{distill_attention_forward.1} parent=11 // pred_check_branch
          %251 = sbr.rel (%p249) target = $region40
        $region39: #{distill_attention_forward.1} parent=11 // pred_region
          _
        $region40: #{distill_attention_forward.1} parent=11 // pred_fallthru
          _
      $region12: #{distill_attention_forward.1} parent=5 // pred_fallthru
        _
      %p252 = scmp.lt.s32.totalorder %s17, 2
      // Predicated region
      $region41: #{distill_attention_forward.1} parent=5 // pred_check
        %p253 = pneg %p252
      $region42: #{distill_attention_forward.1} parent=5 // pred_check_branch
        %255 = sbr.rel (%p253) target = $region44
      $region43: #{distill_attention_forward.1} parent=5 // pred_region
        // Predicated region
        $region45: #{distill_attention_forward.1} parent=43 // pred_check
          %p256 = pneg %p37
        $region46: #{distill_attention_forward.1} parent=43 // pred_check_branch
          %258 = sbr.rel (%p256) target = $region48
        $region47: #{distill_attention_forward.1} parent=43 // pred_region
          %s259 = smul.u32 8, %s17
          %p260 = scmp.lt.s32.totalorder %s259, 15
          %s261 = scalar_select %p260, %s259, 15
          %s262 = smul.addr %s261, 2
          %s263 = smul.addr %s262, 4
          %s264 = scalar_lea.vmem %s0, %s263
          %s265 = smul.u32 8, %s17
        $region48: #{distill_attention_forward.1} parent=43 // pred_fallthru
          _
      $region44: #{distill_attention_forward.1} parent=5 // pred_fallthru
        _
      %p266 = scmp.le.s32.totalorder 1, %s17
      %p267 = scmp.lt.s32.totalorder %s17, 3
      %p268 = pnand %p266, %p267
      %p269 = pneg %p268
      // Predicated region
      $region49: #{distill_attention_forward.1} parent=5 // pred_check
        _
      $region50: #{distill_attention_forward.1} parent=5 // pred_check_branch
        %271 = sbr.rel (%p268) target = $region52
      $region51: #{distill_attention_forward.1} parent=5 // pred_region
        %s272 = ssub.s32 %s17, 1
        %s273 = smul.u32 8, %s22
        %p274 = scmp.lt.s32.totalorder %s273, 15
        %s275 = scalar_select %p274, %s273, 15
        %s276 = smul.addr %s275, 2
        %s277 = smul.addr %s276, 4
        %s278 = scalar_lea.vmem %s0, %s277
        %p279 = pneg %p43
        %p280 = pneg %p40
        %p281 = pneg %p64
        %p282 = pneg %p61
        %p283 = pneg %p85
        %p284 = pneg %p82
        %p285 = pneg %p106
        %p286 = pneg %p103
        %p287 = pneg %p127
        %p288 = pneg %p124
        %p289 = pneg %p148
        %p290 = pneg %p145
        %p291 = pneg %p169
        %p292 = pneg %p166
        %p293 = pneg %p190
        %p294 = pneg %p187
        %p295 = pneg %p216
        %p296 = pneg %p213
        %s297 = sand.u32 %s203, 1
        %s298 = scalar_lea.sflag [#allocation3], %s297
        %s299 = sand.u32 %s203, 1
        %s300 = smul.addr %s299, 8
        %s301 = scalar_lea.vmem [#allocation2], %s300
        %s302 = smul.u32 8, %s22
        %p303 = scmp.lt.s32.totalorder %s302, 15
        %s304 = scalar_select %p303, %s302, 15
        %s305 = smul.addr %s304, 2
        %s306 = smul.addr %s305, 4
        %s307 = scalar_lea.vmem %s0, %s306
        %s308 = smul.u32 8, %s22
        %v310 = vld [vmem:[%s307] sm:$0xf]
        %v311 = vld [vmem:[%s307 + $0x4] sm:$0xf]
        %v312 = vld [vmem:[%s307 + $0x8] sm:$0xf]
        %v313 = vld [vmem:[%s307 + $0xc] sm:$0xf]
        %v314 = vld [vmem:[%s307 + $0x10] sm:$0xf]
        %v315 = vld [vmem:[%s307 + $0x14] sm:$0xf]
        %v316 = vld [vmem:[%s307 + $0x18] sm:$0xf]
        %v317 = vld [vmem:[%s307 + $0x1c] sm:$0xf]
        %v318 = vld [vmem:[%s307 + $0x20] sm:$0xf]
        %v319 = vld [vmem:[%s307 + $0x24] sm:$0xf]
        %v320 = vld [vmem:[%s307 + $0x28] sm:$0xf]
        %v321 = vld [vmem:[%s307 + $0x2c] sm:$0xf]
        %v322 = vld [vmem:[%s307 + $0x30] sm:$0xf]
        %v323 = vld [vmem:[%s307 + $0x34] sm:$0xf]
        %v324 = vld [vmem:[%s307 + $0x38] sm:$0xf]
        %v325 = vld [vmem:[%s307 + $0x3c] sm:$0xf]
        %v326 = vld [vmem:[%s2] sm:$0xf]
        %v327 = vld [vmem:[%s2 + $0x4] sm:$0xf]
        %v328 = vld [vmem:[%s2 + $0x8] sm:$0xf]
        %v329 = vld [vmem:[%s2 + $0xc] sm:$0xf]
        %v330 = vld [vmem:[%s2 + $0x10] sm:$0xf]
        %v331 = vld [vmem:[%s2 + $0x14] sm:$0xf]
        %v332 = vld [vmem:[%s2 + $0x18] sm:$0xf]
        %v333 = vld [vmem:[%s2 + $0x1c] sm:$0xf]
        %v350 = vunpack.c.l.b16 %v310
        %v351 = vunpack.c.l.b16 %v311
        %v352 = vunpack.c.l.b16 %v312
        %v353 = vunpack.c.l.b16 %v313
        %v354 = vunpack.c.l.b16 %v314
        %v355 = vunpack.c.l.b16 %v315
        %v356 = vunpack.c.l.b16 %v316
        %v357 = vunpack.c.l.b16 %v317
        %v358 = vunpack.c.l.b16 %v318
        %v359 = vunpack.c.l.b16 %v319
        %v360 = vunpack.c.l.b16 %v320
        %v361 = vunpack.c.l.b16 %v321
        %v362 = vunpack.c.l.b16 %v322
        %v363 = vunpack.c.l.b16 %v323
        %v364 = vunpack.c.l.b16 %v324
        %v365 = vunpack.c.l.b16 %v325
        %v366 = vpack.c.b16 %v351, %v350
        %v367 = vpack.c.b16 %v353, %v352
        %v368 = vpack.c.b16 %v355, %v354
        %v369 = vpack.c.b16 %v357, %v356
        %v370 = vpack.c.b16 %v359, %v358
        %v371 = vpack.c.b16 %v361, %v360
        %v372 = vpack.c.b16 %v363, %v362
        %v373 = vpack.c.b16 %v365, %v364
        %v382 = vunpack.c.l.b16 %v326
        %v383 = vunpack.c.l.b16 %v327
        %v384 = vunpack.c.l.b16 %v328
        %v385 = vunpack.c.l.b16 %v329
        %v386 = vunpack.c.l.b16 %v330
        %v387 = vunpack.c.l.b16 %v331
        %v388 = vunpack.c.l.b16 %v332
        %v389 = vunpack.c.l.b16 %v333
        %v390 = vpack.c.b16 %v383, %v382
        %v391 = vpack.c.b16 %v385, %v384
        %v392 = vpack.c.b16 %v387, %v386
        %v393 = vpack.c.b16 %v389, %v388
        %vm398 = vcmask 523264
        %v400 = vsel %vm398, %v366, 0
        %v403 = vsel %vm398, %v367, 0
        %v406 = vsel %vm398, %v368, 0
        %v409 = vsel %vm398, %v369, 0
        %v412 = vsel %vm398, %v370, 0
        %v415 = vsel %vm398, %v371, 0
        %v418 = vsel %vm398, %v372, 0
        %v421 = vsel %vm398, %v373, 0
        %423 = vmatpush.bf16.msra.mxu0 0
        %424 = vmatpush.bf16.msra.mxu0 0
        %425 = vmatpush.bf16.msra.mxu0 0
        %426 = vmatpush.bf16.msra.mxu0 0
        %427 = vmatpush.bf16.msra.mxu0 %v393
        %428 = vmatpush.bf16.msra.mxu0 %v392
        %429 = vmatpush.bf16.msra.mxu0 %v391
        %430 = vmatpush.bf16.msra.mxu0 %v390
        %431 = vmatmul.bf16.gmra.mxu0 %v400
        %v432 = vpop.f32.mrf.mxu0
        %v433 = vadd.f32 0.0, %v432
        %v434 = vpop.f32.mrf.mxu0
        %v435 = vadd.f32 0.0, %v434
        %436 = vmatmul.bf16.gmra.mxu0 %v403
        %v437 = vpop.f32.mrf.mxu0
        %v438 = vadd.f32 0.0, %v437
        %v439 = vpop.f32.mrf.mxu0
        %v440 = vadd.f32 0.0, %v439
        %441 = vmatmul.bf16.gmra.mxu0 %v406
        %v442 = vpop.f32.mrf.mxu0
        %v443 = vadd.f32 0.0, %v442
        %v444 = vpop.f32.mrf.mxu0
        %v445 = vadd.f32 0.0, %v444
        %446 = vmatmul.bf16.gmra.mxu0 %v409
        %v447 = vpop.f32.mrf.mxu0
        %v448 = vadd.f32 0.0, %v447
        %v449 = vpop.f32.mrf.mxu0
        %v450 = vadd.f32 0.0, %v449
        %451 = vmatmul.bf16.gmra.mxu0 %v412
        %v452 = vpop.f32.mrf.mxu0
        %v453 = vadd.f32 0.0, %v452
        %v454 = vpop.f32.mrf.mxu0
        %v455 = vadd.f32 0.0, %v454
        %456 = vmatmul.bf16.gmra.mxu0 %v415
        %v457 = vpop.f32.mrf.mxu0
        %v458 = vadd.f32 0.0, %v457
        %v459 = vpop.f32.mrf.mxu0
        %v460 = vadd.f32 0.0, %v459
        %461 = vmatmul.bf16.gmra.mxu0 %v418
        %v462 = vpop.f32.mrf.mxu0
        %v463 = vadd.f32 0.0, %v462
        %v464 = vpop.f32.mrf.mxu0
        %v465 = vadd.f32 0.0, %v464
        %466 = vmatmul.bf16.gmra.mxu0 %v421
        %v467 = vpop.f32.mrf.mxu0
        %v468 = vadd.f32 0.0, %v467
        %v469 = vpop.f32.mrf.mxu0
        %v470 = vadd.f32 0.0, %v469
        %471 = vdwg.mxu0
        %v472 = vld [vmem:[%s1] sm:$0xf]
        %v473 = vld [vmem:[%s1 + $0x4] sm:$0xf]
        %v474 = vld [vmem:[%s1 + $0x8] sm:$0xf]
        %v475 = vld [vmem:[%s1 + $0xc] sm:$0xf]
        %v476 = vld [vmem:[%s1 + $0x10] sm:$0xf]
        %v477 = vld [vmem:[%s1 + $0x14] sm:$0xf]
        %v478 = vld [vmem:[%s1 + $0x18] sm:$0xf]
        %v479 = vld [vmem:[%s1 + $0x1c] sm:$0xf]
        %v480 = vpack.c.b16 %v350, %v350
        %v481 = vpack.c.b16 %v352, %v352
        %v482 = vpack.c.b16 %v354, %v354
        %v483 = vpack.c.b16 %v356, %v356
        %v484 = vpack.c.b16 %v358, %v358
        %v485 = vpack.c.b16 %v360, %v360
        %v486 = vpack.c.b16 %v362, %v362
        %v487 = vpack.c.b16 %v364, %v364
        %v488 = vunpack.c.l.b16 %v480
        %v489 = vunpack.c.l.b16 %v481
        %v490 = vunpack.c.l.b16 %v482
        %v491 = vunpack.c.l.b16 %v483
        %v492 = vunpack.c.l.b16 %v484
        %v493 = vunpack.c.l.b16 %v485
        %v494 = vunpack.c.l.b16 %v486
        %v495 = vunpack.c.l.b16 %v487
        %v496 = vrot.slane %v489, 7
        %vm497 = vcmask 1041409
        %v498 = vsel %vm497, %v496, %v488
        %v499 = vrot.slane %v490, 6
        %vm500 = vcmask 1042434
        %v501 = vsel %vm500, %v499, %v498
        %v502 = vrot.slane %v491, 5
        %vm503 = vcmask 1043459
        %v504 = vsel %vm503, %v502, %v501
        %v505 = vrot.slane %v492, 4
        %vm506 = vcmask 1044484
        %v507 = vsel %vm506, %v505, %v504
        %v508 = vrot.slane %v493, 3
        %vm509 = vcmask 1045509
        %v510 = vsel %vm509, %v508, %v507
        %v511 = vrot.slane %v494, 2
        %vm512 = vcmask 1046534
        %v513 = vsel %vm512, %v511, %v510
        %v514 = vrot.slane %v495, 1
        %vm515 = vcmask 1047559
        %v516 = vsel %vm515, %v514, %v513
        %v517 = vpack.c.b16 %v516, %v516
        %v526 = vunpack.c.l.b16 %v472
        %v527 = vunpack.c.l.b16 %v473
        %v528 = vunpack.c.l.b16 %v474
        %v529 = vunpack.c.l.b16 %v475
        %v530 = vunpack.c.l.b16 %v476
        %v531 = vunpack.c.l.b16 %v477
        %v532 = vunpack.c.l.b16 %v478
        %v533 = vunpack.c.l.b16 %v479
        %v534 = vpack.c.b16 %v527, %v526
        %v535 = vpack.c.b16 %v529, %v528
        %v536 = vpack.c.b16 %v531, %v530
        %v537 = vpack.c.b16 %v533, %v532
        %v543 = vsel %vm398, %v517, 0
        %545 = vmatpush.bf16.msra.mxu0 0
        %546 = vmatpush.bf16.msra.mxu0 0
        %547 = vmatpush.bf16.msra.mxu0 0
        %548 = vmatpush.bf16.msra.mxu0 0
        %549 = vmatpush.bf16.msra.mxu0 %v537
        %550 = vmatpush.bf16.msra.mxu0 %v536
        %551 = vmatpush.bf16.msra.mxu0 %v535
        %552 = vmatpush.bf16.msra.mxu0 %v534
        %553 = vmatmul.bf16.gmra.mxu0 %v543
        %v554 = vpop.f32.mrf.mxu0
        %v555 = vadd.f32 0.0, %v554
        %v556 = vpop.f32.mrf.mxu0
        %557 = vdwg.mxu0
        %v559 = vrot.slane %v555, 1
        %v560 = vrot.slane %v555, 2
        %v561 = vrot.slane %v555, 3
        %v562 = vrot.slane %v555, 4
        %v563 = vrot.slane %v555, 5
        %v564 = vrot.slane %v555, 6
        %v565 = vrot.slane %v555, 7
        %v566 = vperm.slane %v555, 0
        %v567 = vperm.slane %v559, 0
        %v568 = vperm.slane %v560, 0
        %v569 = vperm.slane %v561, 0
        %v570 = vperm.slane %v562, 0
        %v571 = vperm.slane %v563, 0
        %v572 = vperm.slane %v564, 0
        %v573 = vperm.slane %v565, 0
        %v582 = vmul.f32 %v433, %v566
        %v583 = vmul.f32 %v435, %v566
        %v584 = vmul.f32 %v438, %v567
        %v585 = vmul.f32 %v440, %v567
        %v586 = vmul.f32 %v443, %v568
        %v587 = vmul.f32 %v445, %v568
        %v588 = vmul.f32 %v448, %v569
        %v589 = vmul.f32 %v450, %v569
        %v590 = vmul.f32 %v453, %v570
        %v591 = vmul.f32 %v455, %v570
        %v592 = vmul.f32 %v458, %v571
        %v593 = vmul.f32 %v460, %v571
        %v594 = vmul.f32 %v463, %v572
        %v595 = vmul.f32 %v465, %v572
        %v596 = vmul.f32 %v468, %v573
        %v597 = vmul.f32 %v470, %v573
        %v598 = vld [vmem:[%s5] sm:$0xff]
        %v599 = vld [vmem:[%s5 + $0x8] sm:$0xff]
        %v600 = vld [vmem:[%s5 + $0x10] sm:$0xff]
        %v601 = vld [vmem:[%s5 + $0x18] sm:$0xff]
        %v602 = vld [vmem:[%s5 + $0x20] sm:$0xff]
        %v603 = vld [vmem:[%s5 + $0x28] sm:$0xff]
        %v604 = vld [vmem:[%s5 + $0x30] sm:$0xff]
        %v605 = vld [vmem:[%s5 + $0x38] sm:$0xff]
        %v607 = vsel %vm398, %v582, 0
        %v610 = vsel %vm398, %v583, 0
        %v613 = vsel %vm398, %v584, 0
        %v616 = vsel %vm398, %v585, 0
        %v619 = vsel %vm398, %v586, 0
        %v622 = vsel %vm398, %v587, 0
        %v625 = vsel %vm398, %v588, 0
        %v628 = vsel %vm398, %v589, 0
        %v631 = vsel %vm398, %v590, 0
        %v634 = vsel %vm398, %v591, 0
        %v637 = vsel %vm398, %v592, 0
        %v640 = vsel %vm398, %v593, 0
        %v643 = vsel %vm398, %v594, 0
        %v646 = vsel %vm398, %v595, 0
        %v649 = vsel %vm398, %v596, 0
        %v652 = vsel %vm398, %v597, 0
        %654 = vmatpush.msra.mxu0 0.0
        %655 = vmatpush.msra.mxu0 0.0
        %656 = vmatpush.msra.mxu0 0.0
        %657 = vmatpush.msra.mxu0 0.0
        %658 = vmatpush.msra.mxu0 0.0
        %659 = vmatpush.msra.mxu0 0.0
        %660 = vmatpush.msra.mxu0 0.0
        %661 = vmatpush.msra.mxu0 0.0
        %662 = vmatpush.msra.mxu0 %v605
        %663 = vmatpush.msra.mxu0 %v604
        %664 = vmatpush.msra.mxu0 %v603
        %665 = vmatpush.msra.mxu0 %v602
        %666 = vmatpush.msra.mxu0 %v601
        %667 = vmatpush.msra.mxu0 %v600
        %668 = vmatpush.msra.mxu0 %v599
        %669 = vmatpush.msra.mxu0 %v598
        %670 = vmatmul.f32.gmra.mxu0 %v607
        %v671 = vpop.f32.mrf.mxu0
        %v672 = vadd.f32 0.0, %v671
        %673 = vmatmul.f32.gmra.mxu0 %v610
        %v674 = vpop.f32.mrf.mxu0
        %v675 = vadd.f32 0.0, %v674
        %676 = vmatmul.f32.gmra.mxu0 %v613
        %v677 = vpop.f32.mrf.mxu0
        %v678 = vadd.f32 0.0, %v677
        %679 = vmatmul.f32.gmra.mxu0 %v616
        %v680 = vpop.f32.mrf.mxu0
        %v681 = vadd.f32 0.0, %v680
        %682 = vmatmul.f32.gmra.mxu0 %v619
        %v683 = vpop.f32.mrf.mxu0
        %v684 = vadd.f32 0.0, %v683
        %685 = vmatmul.f32.gmra.mxu0 %v622
        %v686 = vpop.f32.mrf.mxu0
        %v687 = vadd.f32 0.0, %v686
        %688 = vmatmul.f32.gmra.mxu0 %v625
        %v689 = vpop.f32.mrf.mxu0
        %v690 = vadd.f32 0.0, %v689
        %691 = vmatmul.f32.gmra.mxu0 %v628
        %v692 = vpop.f32.mrf.mxu0
        %v693 = vadd.f32 0.0, %v692
        %694 = vmatmul.f32.gmra.mxu0 %v631
        %v695 = vpop.f32.mrf.mxu0
        %v696 = vadd.f32 0.0, %v695
        %697 = vmatmul.f32.gmra.mxu0 %v634
        %v698 = vpop.f32.mrf.mxu0
        %v699 = vadd.f32 0.0, %v698
        %700 = vmatmul.f32.gmra.mxu0 %v637
        %v701 = vpop.f32.mrf.mxu0
        %v702 = vadd.f32 0.0, %v701
        %703 = vmatmul.f32.gmra.mxu0 %v640
        %v704 = vpop.f32.mrf.mxu0
        %v705 = vadd.f32 0.0, %v704
        %706 = vmatmul.f32.gmra.mxu0 %v643
        %v707 = vpop.f32.mrf.mxu0
        %v708 = vadd.f32 0.0, %v707
        %709 = vmatmul.f32.gmra.mxu0 %v646
        %v710 = vpop.f32.mrf.mxu0
        %v711 = vadd.f32 0.0, %v710
        %712 = vmatmul.f32.gmra.mxu0 %v649
        %v713 = vpop.f32.mrf.mxu0
        %v714 = vadd.f32 0.0, %v713
        %715 = vmatmul.f32.gmra.mxu0 %v652
        %v716 = vpop.f32.mrf.mxu0
        %v717 = vadd.f32 0.0, %v716
        %718 = vdwg.mxu0
        %v719 = vld [vmem:[%s7] sm:$0xff]
        %v720 = vld [vmem:[%s7 + $0x8] sm:$0xff]
        %v721 = vadd.f32 %v672, %v719
        %v722 = vadd.f32 %v675, %v720
        %v723 = vadd.f32 %v678, %v719
        %v724 = vadd.f32 %v681, %v720
        %v725 = vadd.f32 %v684, %v719
        %v726 = vadd.f32 %v687, %v720
        %v727 = vadd.f32 %v690, %v719
        %v728 = vadd.f32 %v693, %v720
        %v729 = vadd.f32 %v696, %v719
        %v730 = vadd.f32 %v699, %v720
        %v731 = vadd.f32 %v702, %v719
        %v732 = vadd.f32 %v705, %v720
        %v733 = vadd.f32 %v708, %v719
        %v734 = vadd.f32 %v711, %v720
        %v735 = vadd.f32 %v714, %v719
        %v736 = vadd.f32 %v717, %v720
        %vm737 = vcmask 64512
        %v738 = vsel %vm737, %v721, -inf
        %v739 = vsel %vm737, %v722, -inf
        %v740 = vmax.f32 %v738, %v739
        %v741 = vrot.slane %v740, 4
        %v742 = vmax.f32 %v740, %v741
        %v743 = vrot.slane %v742, 2
        %v744 = vmax.f32 %v742, %v743
        %v745 = vrot.slane %v744, 1
        %v746 = vmax.f32 %v744, %v745
        %v747 = vsel %vm737, %v723, -inf
        %v748 = vsel %vm737, %v724, -inf
        %v749 = vmax.f32 %v747, %v748
        %v750 = vrot.slane %v749, 4
        %v751 = vmax.f32 %v749, %v750
        %v752 = vrot.slane %v751, 2
        %v753 = vmax.f32 %v751, %v752
        %v754 = vrot.slane %v753, 1
        %v755 = vmax.f32 %v753, %v754
        %v756 = vsel %vm737, %v725, -inf
        %v757 = vsel %vm737, %v726, -inf
        %v758 = vmax.f32 %v756, %v757
        %v759 = vrot.slane %v758, 4
        %v760 = vmax.f32 %v758, %v759
        %v761 = vrot.slane %v760, 2
        %v762 = vmax.f32 %v760, %v761
        %v763 = vrot.slane %v762, 1
        %v764 = vmax.f32 %v762, %v763
        %v765 = vsel %vm737, %v727, -inf
        %v766 = vsel %vm737, %v728, -inf
        %v767 = vmax.f32 %v765, %v766
        %v768 = vrot.slane %v767, 4
        %v769 = vmax.f32 %v767, %v768
        %v770 = vrot.slane %v769, 2
        %v771 = vmax.f32 %v769, %v770
        %v772 = vrot.slane %v771, 1
        %v773 = vmax.f32 %v771, %v772
        %v774 = vsel %vm737, %v729, -inf
        %v775 = vsel %vm737, %v730, -inf
        %v776 = vmax.f32 %v774, %v775
        %v777 = vrot.slane %v776, 4
        %v778 = vmax.f32 %v776, %v777
        %v779 = vrot.slane %v778, 2
        %v780 = vmax.f32 %v778, %v779
        %v781 = vrot.slane %v780, 1
        %v782 = vmax.f32 %v780, %v781
        %v783 = vsel %vm737, %v731, -inf
        %v784 = vsel %vm737, %v732, -inf
        %v785 = vmax.f32 %v783, %v784
        %v786 = vrot.slane %v785, 4
        %v787 = vmax.f32 %v785, %v786
        %v788 = vrot.slane %v787, 2
        %v789 = vmax.f32 %v787, %v788
        %v790 = vrot.slane %v789, 1
        %v791 = vmax.f32 %v789, %v790
        %v792 = vsel %vm737, %v733, -inf
        %v793 = vsel %vm737, %v734, -inf
        %v794 = vmax.f32 %v792, %v793
        %v795 = vrot.slane %v794, 4
        %v796 = vmax.f32 %v794, %v795
        %v797 = vrot.slane %v796, 2
        %v798 = vmax.f32 %v796, %v797
        %v799 = vrot.slane %v798, 1
        %v800 = vmax.f32 %v798, %v799
        %v801 = vsel %vm737, %v735, -inf
        %v802 = vsel %vm737, %v736, -inf
        %v803 = vmax.f32 %v801, %v802
        %v804 = vrot.slane %v803, 4
        %v805 = vmax.f32 %v803, %v804
        %v806 = vrot.slane %v805, 2
        %v807 = vmax.f32 %v805, %v806
        %v808 = vrot.slane %v807, 1
        %v809 = vmax.f32 %v807, %v808
        %v810 = vsub.f32 %v721, %v746
        %v811 = vsub.f32 %v722, %v746
        %v812 = vsub.f32 %v723, %v755
        %v813 = vsub.f32 %v724, %v755
        %v814 = vsub.f32 %v725, %v764
        %v815 = vsub.f32 %v726, %v764
        %v816 = vsub.f32 %v727, %v773
        %v817 = vsub.f32 %v728, %v773
        %v818 = vsub.f32 %v729, %v782
        %v819 = vsub.f32 %v730, %v782
        %v820 = vsub.f32 %v731, %v791
        %v821 = vsub.f32 %v732, %v791
        %v822 = vsub.f32 %v733, %v800
        %v823 = vsub.f32 %v734, %v800
        %v824 = vsub.f32 %v735, %v809
        %v825 = vsub.f32 %v736, %v809
        %v826 = vmul.f32 %v810, 1.442695
        %v827 = vpow.pop %v826
        %v828 = vmul.f32 %v811, 1.442695
        %v829 = vpow.pop %v828
        %v830 = vmul.f32 %v812, 1.442695
        %v831 = vpow.pop %v830
        %v832 = vmul.f32 %v813, 1.442695
        %v833 = vpow.pop %v832
        %v834 = vmul.f32 %v814, 1.442695
        %v835 = vpow.pop %v834
        %v836 = vmul.f32 %v815, 1.442695
        %v837 = vpow.pop %v836
        %v838 = vmul.f32 %v816, 1.442695
        %v839 = vpow.pop %v838
        %v840 = vmul.f32 %v817, 1.442695
        %v841 = vpow.pop %v840
        %v842 = vmul.f32 %v818, 1.442695
        %v843 = vpow.pop %v842
        %v844 = vmul.f32 %v819, 1.442695
        %v845 = vpow.pop %v844
        %v846 = vmul.f32 %v820, 1.442695
        %v847 = vpow.pop %v846
        %v848 = vmul.f32 %v821, 1.442695
        %v849 = vpow.pop %v848
        %v850 = vmul.f32 %v822, 1.442695
        %v851 = vpow.pop %v850
        %v852 = vmul.f32 %v823, 1.442695
        %v853 = vpow.pop %v852
        %v854 = vmul.f32 %v824, 1.442695
        %v855 = vpow.pop %v854
        %v856 = vmul.f32 %v825, 1.442695
        %v857 = vpow.pop %v856
        %v858 = vsel %vm737, %v827, 0.0
        %v859 = vsel %vm737, %v829, 0.0
        %v860 = vadd.f32 %v858, %v859
        %v861 = vrot.slane %v860, 4
        %v862 = vadd.f32 %v860, %v861
        %v863 = vrot.slane %v862, 2
        %v864 = vadd.f32 %v862, %v863
        %v865 = vrot.slane %v864, 1
        %v866 = vadd.f32 %v864, %v865
        %v867 = vsel %vm737, %v831, 0.0
        %v868 = vsel %vm737, %v833, 0.0
        %v869 = vadd.f32 %v867, %v868
        %v870 = vrot.slane %v869, 4
        %v871 = vadd.f32 %v869, %v870
        %v872 = vrot.slane %v871, 2
        %v873 = vadd.f32 %v871, %v872
        %v874 = vrot.slane %v873, 1
        %v875 = vadd.f32 %v873, %v874
        %v876 = vsel %vm737, %v835, 0.0
        %v877 = vsel %vm737, %v837, 0.0
        %v878 = vadd.f32 %v876, %v877
        %v879 = vrot.slane %v878, 4
        %v880 = vadd.f32 %v878, %v879
        %v881 = vrot.slane %v880, 2
        %v882 = vadd.f32 %v880, %v881
        %v883 = vrot.slane %v882, 1
        %v884 = vadd.f32 %v882, %v883
        %v885 = vsel %vm737, %v839, 0.0
        %v886 = vsel %vm737, %v841, 0.0
        %v887 = vadd.f32 %v885, %v886
        %v888 = vrot.slane %v887, 4
        %v889 = vadd.f32 %v887, %v888
        %v890 = vrot.slane %v889, 2
        %v891 = vadd.f32 %v889, %v890
        %v892 = vrot.slane %v891, 1
        %v893 = vadd.f32 %v891, %v892
        %v894 = vsel %vm737, %v843, 0.0
        %v895 = vsel %vm737, %v845, 0.0
        %v896 = vadd.f32 %v894, %v895
        %v897 = vrot.slane %v896, 4
        %v898 = vadd.f32 %v896, %v897
        %v899 = vrot.slane %v898, 2
        %v900 = vadd.f32 %v898, %v899
        %v901 = vrot.slane %v900, 1
        %v902 = vadd.f32 %v900, %v901
        %v903 = vsel %vm737, %v847, 0.0
        %v904 = vsel %vm737, %v849, 0.0
        %v905 = vadd.f32 %v903, %v904
        %v906 = vrot.slane %v905, 4
        %v907 = vadd.f32 %v905, %v906
        %v908 = vrot.slane %v907, 2
        %v909 = vadd.f32 %v907, %v908
        %v910 = vrot.slane %v909, 1
        %v911 = vadd.f32 %v909, %v910
        %v912 = vsel %vm737, %v851, 0.0
        %v913 = vsel %vm737, %v853, 0.0
        %v914 = vadd.f32 %v912, %v913
        %v915 = vrot.slane %v914, 4
        %v916 = vadd.f32 %v914, %v915
        %v917 = vrot.slane %v916, 2
        %v918 = vadd.f32 %v916, %v917
        %v919 = vrot.slane %v918, 1
        %v920 = vadd.f32 %v918, %v919
        %v921 = vsel %vm737, %v855, 0.0
        %v922 = vsel %vm737, %v857, 0.0
        %v923 = vadd.f32 %v921, %v922
        %v924 = vrot.slane %v923, 4
        %v925 = vadd.f32 %v923, %v924
        %v926 = vrot.slane %v925, 2
        %v927 = vadd.f32 %v925, %v926
        %v928 = vrot.slane %v927, 1
        %v929 = vadd.f32 %v927, %v928
        %v930 = vrcp.pop %v866
        %v931 = vrcp.pop %v875
        %v932 = vrcp.pop %v884
        %v933 = vrcp.pop %v893
        %v934 = vrcp.pop %v902
        %v935 = vrcp.pop %v911
        %v936 = vrcp.pop %v920
        %v937 = vrcp.pop %v929
        %v938 = vmul.f32 %v827, %v930
        %v939 = vmul.f32 %v829, %v930
        %v940 = vmul.f32 %v831, %v931
        %v941 = vmul.f32 %v833, %v931
        %v942 = vmul.f32 %v835, %v932
        %v943 = vmul.f32 %v837, %v932
        %v944 = vmul.f32 %v839, %v933
        %v945 = vmul.f32 %v841, %v933
        %v946 = vmul.f32 %v843, %v934
        %v947 = vmul.f32 %v845, %v934
        %v948 = vmul.f32 %v847, %v935
        %v949 = vmul.f32 %v849, %v935
        %v950 = vmul.f32 %v851, %v936
        %v951 = vmul.f32 %v853, %v936
        %v952 = vmul.f32 %v855, %v937
        %v953 = vmul.f32 %v857, %v937
        %v954 = vld [vmem:[%s6] sm:$0xff]
        %v956 = vsel %vm737, %v938, 0
        %v959 = vsel %vm737, %v939, 0
        %v962 = vsel %vm737, %v940, 0
        %v965 = vsel %vm737, %v941, 0
        %v968 = vsel %vm737, %v942, 0
        %v971 = vsel %vm737, %v943, 0
        %v974 = vsel %vm737, %v944, 0
        %v977 = vsel %vm737, %v945, 0
        %v980 = vsel %vm737, %v946, 0
        %v983 = vsel %vm737, %v947, 0
        %v986 = vsel %vm737, %v948, 0
        %v989 = vsel %vm737, %v949, 0
        %v992 = vsel %vm737, %v950, 0
        %v995 = vsel %vm737, %v951, 0
        %v998 = vsel %vm737, %v952, 0
        %v1001 = vsel %vm737, %v953, 0
        %1003 = vmatpush.msra.mxu0 0.0
        %1004 = vmatpush.msra.mxu0 0.0
        %1005 = vmatpush.msra.mxu0 0.0
        %1006 = vmatpush.msra.mxu0 0.0
        %1007 = vmatpush.msra.mxu0 0.0
        %1008 = vmatpush.msra.mxu0 0.0
        %1009 = vmatpush.msra.mxu0 0.0
        %1010 = vmatpush.msra.mxu0 0.0
        %1011 = vmatpush.msra.mxu0 0.0
        %1012 = vmatpush.msra.mxu0 0.0
        %1013 = vmatpush.msra.mxu0 0.0
        %1014 = vmatpush.msra.mxu0 0.0
        %1015 = vmatpush.msra.mxu0 0.0
        %1016 = vmatpush.msra.mxu0 0.0
        %1017 = vmatpush.msra.mxu0 0.0
        %1018 = vmatpush.msra.mxu0 %v954
        %1019 = vmatmul.f32.gmra.mxu0 %v956
        %v1020 = vpop.f32.mrf.mxu0
        %v1021 = vadd.f32 0.0, %v1020
        %1022 = vmatmul.f32.gmra.mxu0 %v959
        %v1023 = vpop.f32.mrf.mxu0
        %v1024 = vadd.f32 0.0, %v1023
        %1025 = vmatmul.f32.gmra.mxu0 %v962
        %v1026 = vpop.f32.mrf.mxu0
        %v1027 = vadd.f32 0.0, %v1026
        %1028 = vmatmul.f32.gmra.mxu0 %v965
        %v1029 = vpop.f32.mrf.mxu0
        %v1030 = vadd.f32 0.0, %v1029
        %1031 = vmatmul.f32.gmra.mxu0 %v968
        %v1032 = vpop.f32.mrf.mxu0
        %v1033 = vadd.f32 0.0, %v1032
        %1034 = vmatmul.f32.gmra.mxu0 %v971
        %v1035 = vpop.f32.mrf.mxu0
        %v1036 = vadd.f32 0.0, %v1035
        %1037 = vmatmul.f32.gmra.mxu0 %v974
        %v1038 = vpop.f32.mrf.mxu0
        %v1039 = vadd.f32 0.0, %v1038
        %1040 = vmatmul.f32.gmra.mxu0 %v977
        %v1041 = vpop.f32.mrf.mxu0
        %v1042 = vadd.f32 0.0, %v1041
        %1043 = vmatmul.f32.gmra.mxu0 %v980
        %v1044 = vpop.f32.mrf.mxu0
        %v1045 = vadd.f32 0.0, %v1044
        %1046 = vmatmul.f32.gmra.mxu0 %v983
        %v1047 = vpop.f32.mrf.mxu0
        %v1048 = vadd.f32 0.0, %v1047
        %1049 = vmatmul.f32.gmra.mxu0 %v986
        %v1050 = vpop.f32.mrf.mxu0
        %v1051 = vadd.f32 0.0, %v1050
        %1052 = vmatmul.f32.gmra.mxu0 %v989
        %v1053 = vpop.f32.mrf.mxu0
        %v1054 = vadd.f32 0.0, %v1053
        %1055 = vmatmul.f32.gmra.mxu0 %v992
        %v1056 = vpop.f32.mrf.mxu0
        %v1057 = vadd.f32 0.0, %v1056
        %1058 = vmatmul.f32.gmra.mxu0 %v995
        %v1059 = vpop.f32.mrf.mxu0
        %v1060 = vadd.f32 0.0, %v1059
        %1061 = vmatmul.f32.gmra.mxu0 %v998
        %v1062 = vpop.f32.mrf.mxu0
        %v1063 = vadd.f32 0.0, %v1062
        %1064 = vmatmul.f32.gmra.mxu0 %v1001
        %v1065 = vpop.f32.mrf.mxu0
        %v1066 = vadd.f32 0.0, %v1065
        %1067 = vdwg.mxu0
        %1084 = vrot.lane.b32.xlu0 %v433, 64
        %v1085 = vpop.permute.xlu0 %1084
        %1086 = vrot.lane.b32.xlu0 %v435, 64
        %v1087 = vpop.permute.xlu0 %1086
        %1088 = vrot.lane.b32.xlu0 %v438, 64
        %v1089 = vpop.permute.xlu0 %1088
        %1090 = vrot.lane.b32.xlu0 %v440, 64
        %v1091 = vpop.permute.xlu0 %1090
        %1092 = vrot.lane.b32.xlu0 %v443, 64
        %v1093 = vpop.permute.xlu0 %1092
        %1094 = vrot.lane.b32.xlu0 %v445, 64
        %v1095 = vpop.permute.xlu0 %1094
        %1096 = vrot.lane.b32.xlu0 %v448, 64
        %v1097 = vpop.permute.xlu0 %1096
        %1098 = vrot.lane.b32.xlu0 %v450, 64
        %v1099 = vpop.permute.xlu0 %1098
        %1100 = vrot.lane.b32.xlu0 %v453, 64
        %v1101 = vpop.permute.xlu0 %1100
        %1102 = vrot.lane.b32.xlu0 %v455, 64
        %v1103 = vpop.permute.xlu0 %1102
        %1104 = vrot.lane.b32.xlu0 %v458, 64
        %v1105 = vpop.permute.xlu0 %1104
        %1106 = vrot.lane.b32.xlu0 %v460, 64
        %v1107 = vpop.permute.xlu0 %1106
        %1108 = vrot.lane.b32.xlu0 %v463, 64
        %v1109 = vpop.permute.xlu0 %1108
        %1110 = vrot.lane.b32.xlu0 %v465, 64
        %v1111 = vpop.permute.xlu0 %1110
        %1112 = vrot.lane.b32.xlu0 %v468, 64
        %v1113 = vpop.permute.xlu0 %1112
        %1114 = vrot.lane.b32.xlu0 %v470, 64
        %v1115 = vpop.permute.xlu0 %1114
        %v1132 = vmul.f32 %v1021, %v1085
        %v1133 = vmul.f32 %v1024, %v1087
        %v1134 = vmul.f32 %v1027, %v1089
        %v1135 = vmul.f32 %v1030, %v1091
        %v1136 = vmul.f32 %v1033, %v1093
        %v1137 = vmul.f32 %v1036, %v1095
        %v1138 = vmul.f32 %v1039, %v1097
        %v1139 = vmul.f32 %v1042, %v1099
        %v1140 = vmul.f32 %v1045, %v1101
        %v1141 = vmul.f32 %v1048, %v1103
        %v1142 = vmul.f32 %v1051, %v1105
        %v1143 = vmul.f32 %v1054, %v1107
        %v1144 = vmul.f32 %v1057, %v1109
        %v1145 = vmul.f32 %v1060, %v1111
        %v1146 = vmul.f32 %v1063, %v1113
        %v1147 = vmul.f32 %v1066, %v1115
        %v1148 = vsel %vm398, %v1132, 0.0
        %v1149 = vsel %vm398, %v1133, 0.0
        %v1150 = vadd.f32 %v1148, %v1149
        %v1151 = vrot.slane %v1150, 4
        %v1152 = vadd.f32 %v1150, %v1151
        %v1153 = vrot.slane %v1152, 2
        %v1154 = vadd.f32 %v1152, %v1153
        %v1155 = vrot.slane %v1154, 1
        %v1156 = vadd.f32 %v1154, %v1155
        %v1157 = vsel %vm398, %v1134, 0.0
        %v1158 = vsel %vm398, %v1135, 0.0
        %v1159 = vadd.f32 %v1157, %v1158
        %v1160 = vrot.slane %v1159, 4
        %v1161 = vadd.f32 %v1159, %v1160
        %v1162 = vrot.slane %v1161, 2
        %v1163 = vadd.f32 %v1161, %v1162
        %v1164 = vrot.slane %v1163, 1
        %v1165 = vadd.f32 %v1163, %v1164
        %v1166 = vsel %vm398, %v1136, 0.0
        %v1167 = vsel %vm398, %v1137, 0.0
        %v1168 = vadd.f32 %v1166, %v1167
        %v1169 = vrot.slane %v1168, 4
        %v1170 = vadd.f32 %v1168, %v1169
        %v1171 = vrot.slane %v1170, 2
        %v1172 = vadd.f32 %v1170, %v1171
        %v1173 = vrot.slane %v1172, 1
        %v1174 = vadd.f32 %v1172, %v1173
        %v1175 = vsel %vm398, %v1138, 0.0
        %v1176 = vsel %vm398, %v1139, 0.0
        %v1177 = vadd.f32 %v1175, %v1176
        %v1178 = vrot.slane %v1177, 4
        %v1179 = vadd.f32 %v1177, %v1178
        %v1180 = vrot.slane %v1179, 2
        %v1181 = vadd.f32 %v1179, %v1180
        %v1182 = vrot.slane %v1181, 1
        %v1183 = vadd.f32 %v1181, %v1182
        %v1184 = vsel %vm398, %v1140, 0.0
        %v1185 = vsel %vm398, %v1141, 0.0
        %v1186 = vadd.f32 %v1184, %v1185
        %v1187 = vrot.slane %v1186, 4
        %v1188 = vadd.f32 %v1186, %v1187
        %v1189 = vrot.slane %v1188, 2
        %v1190 = vadd.f32 %v1188, %v1189
        %v1191 = vrot.slane %v1190, 1
        %v1192 = vadd.f32 %v1190, %v1191
        %v1193 = vsel %vm398, %v1142, 0.0
        %v1194 = vsel %vm398, %v1143, 0.0
        %v1195 = vadd.f32 %v1193, %v1194
        %v1196 = vrot.slane %v1195, 4
        %v1197 = vadd.f32 %v1195, %v1196
        %v1198 = vrot.slane %v1197, 2
        %v1199 = vadd.f32 %v1197, %v1198
        %v1200 = vrot.slane %v1199, 1
        %v1201 = vadd.f32 %v1199, %v1200
        %v1202 = vsel %vm398, %v1144, 0.0
        %v1203 = vsel %vm398, %v1145, 0.0
        %v1204 = vadd.f32 %v1202, %v1203
        %v1205 = vrot.slane %v1204, 4
        %v1206 = vadd.f32 %v1204, %v1205
        %v1207 = vrot.slane %v1206, 2
        %v1208 = vadd.f32 %v1206, %v1207
        %v1209 = vrot.slane %v1208, 1
        %v1210 = vadd.f32 %v1208, %v1209
        %v1211 = vsel %vm398, %v1146, 0.0
        %v1212 = vsel %vm398, %v1147, 0.0
        %v1213 = vadd.f32 %v1211, %v1212
        %v1214 = vrot.slane %v1213, 4
        %v1215 = vadd.f32 %v1213, %v1214
        %v1216 = vrot.slane %v1215, 2
        %v1217 = vadd.f32 %v1215, %v1216
        %v1218 = vrot.slane %v1217, 1
        %v1219 = vadd.f32 %v1217, %v1218
        %v1220 = vpack.c.bf16 %v1156, %v1156
        %v1221 = vpack.c.bf16 %v1165, %v1165
        %v1222 = vpack.c.bf16 %v1174, %v1174
        %v1223 = vpack.c.bf16 %v1183, %v1183
        %v1224 = vpack.c.bf16 %v1192, %v1192
        %v1225 = vpack.c.bf16 %v1201, %v1201
        %v1226 = vpack.c.bf16 %v1210, %v1210
        %v1227 = vpack.c.bf16 %v1219, %v1219
        %v1228 = vld [vmem:[%s3] sm:$0xf]
        %v1229 = vld [vmem:[%s3 + $0x4] sm:$0xf]
        %v1230 = vld [vmem:[%s3 + $0x8] sm:$0xf]
        %v1231 = vld [vmem:[%s3 + $0xc] sm:$0xf]
        %v1232 = vld [vmem:[%s3 + $0x10] sm:$0xf]
        %v1233 = vld [vmem:[%s3 + $0x14] sm:$0xf]
        %v1234 = vld [vmem:[%s3 + $0x18] sm:$0xf]
        %v1235 = vld [vmem:[%s3 + $0x1c] sm:$0xf]
        %v1236 = vld [vmem:[%s4] sm:$0x1]
        %v1238 = vperm.slane %v1236, 0
        %v1248 = vunpack.c.l.b16 %v1220
        %v1249 = vunpack.c.l.b16 %v1221
        %v1250 = vunpack.c.l.b16 %v1222
        %v1251 = vunpack.c.l.b16 %v1223
        %v1252 = vunpack.c.l.b16 %v1224
        %v1253 = vunpack.c.l.b16 %v1225
        %v1254 = vunpack.c.l.b16 %v1226
        %v1255 = vunpack.c.l.b16 %v1227
        %v1256 = vsel %vm497, %v1249, %v1248
        %v1257 = vsel %vm500, %v1250, %v1256
        %v1258 = vsel %vm503, %v1251, %v1257
        %v1259 = vsel %vm506, %v1252, %v1258
        %v1260 = vsel %vm509, %v1253, %v1259
        %v1261 = vsel %vm512, %v1254, %v1260
        %v1262 = vsel %vm515, %v1255, %v1261
        %v1263 = vpack.c.b16 %v1262, %v1262
        %v1272 = vunpack.c.l.b16 %v1228
        %v1273 = vunpack.c.l.b16 %v1229
        %v1274 = vunpack.c.l.b16 %v1230
        %v1275 = vunpack.c.l.b16 %v1231
        %v1276 = vunpack.c.l.b16 %v1232
        %v1277 = vunpack.c.l.b16 %v1233
        %v1278 = vunpack.c.l.b16 %v1234
        %v1279 = vunpack.c.l.b16 %v1235
        %v1280 = vpack.c.b16 %v1273, %v1272
        %v1281 = vpack.c.b16 %v1275, %v1274
        %v1282 = vpack.c.b16 %v1277, %v1276
        %v1283 = vpack.c.b16 %v1279, %v1278
        %v1289 = vsel %vm398, %v1263, 0
        %1291 = vmatpush.bf16.msra.mxu0 0
        %1292 = vmatpush.bf16.msra.mxu0 0
        %1293 = vmatpush.bf16.msra.mxu0 0
        %1294 = vmatpush.bf16.msra.mxu0 0
        %1295 = vmatpush.bf16.msra.mxu0 %v1283
        %1296 = vmatpush.bf16.msra.mxu0 %v1282
        %1297 = vmatpush.bf16.msra.mxu0 %v1281
        %1298 = vmatpush.bf16.msra.mxu0 %v1280
        %1299 = vmatmul.bf16.gmra.mxu0 %v1289
        %v1300 = vpop.f32.mrf.mxu0
        %v1301 = vadd.f32 %v1238, %v1300
        %v1302 = vpop.f32.mrf.mxu0
        %1303 = vdwg.mxu0
        %1304 = vst.msk [vmem:[%s301] sm:$0xff] %vm398, %v1301
        %s1305 = sand.u32 %s203, 1
        %s1306 = scalar_lea.sflag [#allocation3], %s1305
        %s1307 = sand.u32 %s203, 1
        %s1308 = smul.addr %s1307, 8
        %s1309 = scalar_lea.vmem [#allocation2], %s1308
        // Predicated region
        $region53: #{distill_attention_forward.1} parent=51 // pred_check
          %p1310 = pneg %p213
        $region54: #{distill_attention_forward.1} parent=51 // pred_check_branch
          %1312 = sbr.rel (%p1310) target = $region56
        $region55: #{distill_attention_forward.1} parent=51 // pred_region
          %1314 = vsyncadd %s1306, 0
          %s1315 = smul.addr %s22, 8
          %s1316 = scalar_lea.hbm %s8, %s1315
          %s1318 = sshll.u32 %s1309, 4
          %s1319 = int_to_ptr.vmem [resolvable:$true] %s1318
          %s1320 = sshll.u32 %s1316, 4
          %s1321 = int_to_ptr.hbm [resolvable:$true] %s1320
          %1323 = dma.vmem_to_hbm [thread:$0]  %s1319, 128, %s1321, %s1306
        $region56: #{distill_attention_forward.1} parent=51 // pred_fallthru
          _
      $region52: #{distill_attention_forward.1} parent=5 // pred_fallthru
        _
      %p1324 = scmp.le.s32.totalorder 2, %s17
      // Predicated region
      $region57: #{distill_attention_forward.1} parent=5 // pred_check
        %p1325 = pneg %p1324
      $region58: #{distill_attention_forward.1} parent=5 // pred_check_branch
        %1327 = sbr.rel (%p1325) target = $region60
      $region59: #{distill_attention_forward.1} parent=5 // pred_region
        %s1328 = ssub.s32 %s17, 2
        // Predicated region
        $region61: #{distill_attention_forward.1} parent=59 // pred_check
          %p1329 = pneg %p219
        $region62: #{distill_attention_forward.1} parent=59 // pred_check_branch
          %1331 = sbr.rel (%p1329) target = $region64
        $region63: #{distill_attention_forward.1} parent=59 // pred_region
          %s1332 = sand.u32 %s204, 1
          %s1333 = scalar_lea.sflag [#allocation3], %s1332
          %s1334 = sand.u32 %s204, 1
          %s1335 = smul.addr %s1334, 8
          %s1336 = scalar_lea.vmem [#allocation2], %s1335
          %1338 = dma.done %s1333, 128
        $region64: #{distill_attention_forward.1} parent=59 // pred_fallthru
          _
      $region60: #{distill_attention_forward.1} parent=5 // pred_fallthru
        _
    $region6: #{distill_attention_forward.1} parent=1 // loop_footer
      %s21 = sadd.s32 1, %s17
    $region7: #{distill_attention_forward.1} parent=1 // loop_footer_branch
      %16 = sbr.rel target = $region3
    $region8: #{distill_attention_forward.1} parent=1 // loop_exit
      _
    %1339 = vsyncpa [#allocation3], 1
    %s1340 = scalar_lea.sflag [#allocation3], 1
    %1341 = vsyncpa %s1340, 1

// kernel: distill_attention_forward.1
$region0: #{distill_attention_forward.1}
  #allocation0 [shape = 'u32[]', space=smem, size = 0x4, offset = 0x4, fixed_abs, tag = 'smem constant byte address 0x4 - core index']
  #allocation1 [shape = 'u32[72,128]{1,0:T(1,128)}', space=vmem, size = 0x9000, scoped, tag = 'internal scratch']
  %s0 = inlined_call_operand.vmem [shape: bf16[16,16,64], index: 0, kind: input, shape index: {}]
  %s1 = inlined_call_operand.vmem [shape: bf16[64,64], index: 1, kind: input, shape index: {}]
  %s2 = inlined_call_operand.vmem [shape: bf16[64,128], index: 2, kind: input, shape index: {}]
  %s3 = inlined_call_operand.vmem [shape: bf16[64,64], index: 3, kind: input, shape index: {}]
  %s4 = inlined_call_operand.vmem [shape: f32[1,64], index: 4, kind: input, shape index: {}]
  %s5 = inlined_call_operand.vmem [shape: f32[64,8], index: 5, kind: input, shape index: {}]
  %s6 = inlined_call_operand.vmem [shape: f32[8,64], index: 6, kind: input, shape index: {}]
  %s7 = inlined_call_operand.vmem [shape: f32[16,8], index: 7, kind: input, shape index: {}]
  %s8 = inlined_call_operand.hbm [shape: f32[16,64], index: 8, kind: output, shape index: {}]
  %s9 = sld [smem:[#allocation0]]
  $region65: #{distill_attention_forward.1} parent=0
    _
  %s11 = ssub.s32 1, %s9
  %s12 = scalar_select 0, %s11, %s9
  $region1: #{distill_attention_forward.1} parent=0
    #allocation2 [shape = 'u8[8192]{0}', space=vmem, size = 0x2000, scoped, tag = 'output window, operand 0']
    #allocation3 [shape = 's32[2]{0}', space=sflag, size = 0x8, scoped, tag = 'scoped memory for distill_attention_forward.1']
    %13 = vsyncpa [#allocation3], 0
    %s14 = scalar_lea.sflag [#allocation3], 1
    %15 = vsyncpa %s14, 0
    loop: start=0, step=1, limit=4
    $region2: #{distill_attention_forward.1} parent=1 // loop_pre_header
      _
    $region3: #{distill_attention_forward.1} parent=1 // loop_header
      %s17 = sphi 0, %s21
      %p18 = scmp.ge.s32.totalorder %s17, 4
      %s27 = sphi 0, %s29
      %s30 = sphi 0, %s27
      %s31 = sphi 0, %s30
      %s47 = sphi 0, %s31
      %s51 = sphi 0, %s51
      %s53 = sphi 0, %s51
      %s54 = sphi 0, %s53
      %s68 = sphi 0, %s54
      %s72 = sphi 0, %s72
      %s74 = sphi 0, %s72
      %s75 = sphi 0, %s74
      %s89 = sphi 0, %s75
      %s93 = sphi 0, %s93
      %s95 = sphi 0, %s93
      %s96 = sphi 0, %s95
      %s110 = sphi 0, %s96
      %s114 = sphi 0, %s114
      %s116 = sphi 0, %s114
      %s117 = sphi 0, %s116
      %s131 = sphi 0, %s117
      %s135 = sphi 0, %s135
      %s137 = sphi 0, %s135
      %s138 = sphi 0, %s137
      %s152 = sphi 0, %s138
      %s156 = sphi 0, %s156
      %s158 = sphi 0, %s156
      %s159 = sphi 0, %s158
      %s173 = sphi 0, %s159
      %s177 = sphi 0, %s177
      %s179 = sphi 0, %s177
      %s180 = sphi 0, %s179
      %s194 = sphi 0, %s180
      %s200 = sphi 0, %s202
      %s203 = sphi 0, %s200
      %s204 = sphi 0, %s203
      %s220 = sphi 0, %s204
    $region4: #{distill_attention_forward.1} parent=1 // loop_header_branch
      %20 = sbr.rel (%p18) target = $region8
    $region5: #{distill_attention_forward.1} parent=1 // loop_body
      %s22 = ssub.s32 %s17, 1
      %s23 = ssub.s32 %s17, 2
      %s24 = sadd.s32 %s17, 1
      %s25 = ssub.s32 %s17, %s24
      %p26 = scmp.eq.s32.totalorder %s25, 0
      %s28 = sadd.s32 %s27, 1
      %s29 = scalar_select %p26, %s27, %s28
      %p32 = pneg %p26
      %p33 = scmp.eq.s32.totalorder %s17, 1
      %p34 = por %p32, %p33
      %p35 = scmp.ne.s32.totalorder %s27, %s30
      %p36 = scmp.eq.s32.totalorder %s17, 0
      %p37 = por %p35, %p36
      %p38 = scmp.ne.s32.totalorder %s27, %s30
      %p39 = scmp.eq.s32.totalorder %s22, 1
      %p40 = por %p38, %p39
      %p41 = scmp.ne.s32.totalorder %s30, %s31
      %p42 = scmp.eq.s32.totalorder %s22, 0
      %p43 = por %p41, %p42
      %p44 = scmp.ne.s32.totalorder %s30, %s31
      %p45 = scmp.eq.s32.totalorder %s23, 1
      %p46 = por %p44, %p45
      %p48 = scmp.ne.s32.totalorder %s31, %s47
      %p49 = scmp.eq.s32.totalorder %s23, 0
      %p50 = por %p48, %p49
      %s52 = sadd.s32 %s51, 1
      %p55 = scmp.eq.s32.totalorder %s17, 1
      %p56 = scmp.ne.s32.totalorder %s51, %s53
      %p57 = scmp.eq.s32.totalorder %s17, 0
      %p58 = por %p56, %p57
      %p59 = scmp.ne.s32.totalorder %s51, %s53
      %p60 = scmp.eq.s32.totalorder %s22, 1
      %p61 = por %p59, %p60
      %p62 = scmp.ne.s32.totalorder %s53, %s54
      %p63 = scmp.eq.s32.totalorder %s22, 0
      %p64 = por %p62, %p63
      %p65 = scmp.ne.s32.totalorder %s53, %s54
      %p66 = scmp.eq.s32.totalorder %s23, 1
      %p67 = por %p65, %p66
      %p69 = scmp.ne.s32.totalorder %s54, %s68
      %p70 = scmp.eq.s32.totalorder %s23, 0
      %p71 = por %p69, %p70
      %s73 = sadd.s32 %s72, 1
      %p76 = scmp.eq.s32.totalorder %s17, 1
      %p77 = scmp.ne.s32.totalorder %s72, %s74
      %p78 = scmp.eq.s32.totalorder %s17, 0
      %p79 = por %p77, %p78
      %p80 = scmp.ne.s32.totalorder %s72, %s74
      %p81 = scmp.eq.s32.totalorder %s22, 1
      %p82 = por %p80, %p81
      %p83 = scmp.ne.s32.totalorder %s74, %s75
      %p84 = scmp.eq.s32.totalorder %s22, 0
      %p85 = por %p83, %p84
      %p86 = scmp.ne.s32.totalorder %s74, %s75
      %p87 = scmp.eq.s32.totalorder %s23, 1
      %p88 = por %p86, %p87
      %p90 = scmp.ne.s32.totalorder %s75, %s89
      %p91 = scmp.eq.s32.totalorder %s23, 0
      %p92 = por %p90, %p91
      %s94 = sadd.s32 %s93, 1
      %p97 = scmp.eq.s32.totalorder %s17, 1
      %p98 = scmp.ne.s32.totalorder %s93, %s95
      %p99 = scmp.eq.s32.totalorder %s17, 0
      %p100 = por %p98, %p99
      %p101 = scmp.ne.s32.totalorder %s93, %s95
      %p102 = scmp.eq.s32.totalorder %s22, 1
      %p103 = por %p101, %p102
      %p104 = scmp.ne.s32.totalorder %s95, %s96
      %p105 = scmp.eq.s32.totalorder %s22, 0
      %p106 = por %p104, %p105
      %p107 = scmp.ne.s32.totalorder %s95, %s96
      %p108 = scmp.eq.s32.totalorder %s23, 1
      %p109 = por %p107, %p108
      %p111 = scmp.ne.s32.totalorder %s96, %s110
      %p112 = scmp.eq.s32.totalorder %s23, 0
      %p113 = por %p111, %p112
      %s115 = sadd.s32 %s114, 1
      %p118 = scmp.eq.s32.totalorder %s17, 1
      %p119 = scmp.ne.s32.totalorder %s114, %s116
      %p120 = scmp.eq.s32.totalorder %s17, 0
      %p121 = por %p119, %p120
      %p122 = scmp.ne.s32.totalorder %s114, %s116
      %p123 = scmp.eq.s32.totalorder %s22, 1
      %p124 = por %p122, %p123
      %p125 = scmp.ne.s32.totalorder %s116, %s117
      %p126 = scmp.eq.s32.totalorder %s22, 0
      %p127 = por %p125, %p126
      %p128 = scmp.ne.s32.totalorder %s116, %s117
      %p129 = scmp.eq.s32.totalorder %s23, 1
      %p130 = por %p128, %p129
      %p132 = scmp.ne.s32.totalorder %s117, %s131
      %p133 = scmp.eq.s32.totalorder %s23, 0
      %p134 = por %p132, %p133
      %s136 = sadd.s32 %s135, 1
      %p139 = scmp.eq.s32.totalorder %s17, 1
      %p140 = scmp.ne.s32.totalorder %s135, %s137
      %p141 = scmp.eq.s32.totalorder %s17, 0
      %p142 = por %p140, %p141
      %p143 = scmp.ne.s32.totalorder %s135, %s137
      %p144 = scmp.eq.s32.totalorder %s22, 1
      %p145 = por %p143, %p144
      %p146 = scmp.ne.s32.totalorder %s137, %s138
      %p147 = scmp.eq.s32.totalorder %s22, 0
      %p148 = por %p146, %p147
      %p149 = scmp.ne.s32.totalorder %s137, %s138
      %p150 = scmp.eq.s32.totalorder %s23, 1
      %p151 = por %p149, %p150
      %p153 = scmp.ne.s32.totalorder %s138, %s152
      %p154 = scmp.eq.s32.totalorder %s23, 0
      %p155 = por %p153, %p154
      %s157 = sadd.s32 %s156, 1
      %p160 = scmp.eq.s32.totalorder %s17, 1
      %p161 = scmp.ne.s32.totalorder %s156, %s158
      %p162 = scmp.eq.s32.totalorder %s17, 0
      %p163 = por %p161, %p162
      %p164 = scmp.ne.s32.totalorder %s156, %s158
      %p165 = scmp.eq.s32.totalorder %s22, 1
      %p166 = por %p164, %p165
      %p167 = scmp.ne.s32.totalorder %s158, %s159
      %p168 = scmp.eq.s32.totalorder %s22, 0
      %p169 = por %p167, %p168
      %p170 = scmp.ne.s32.totalorder %s158, %s159
      %p171 = scmp.eq.s32.totalorder %s23, 1
      %p172 = por %p170, %p171
      %p174 = scmp.ne.s32.totalorder %s159, %s173
      %p175 = scmp.eq.s32.totalorder %s23, 0
      %p176 = por %p174, %p175
      %s178 = sadd.s32 %s177, 1
      %p181 = scmp.eq.s32.totalorder %s17, 1
      %p182 = scmp.ne.s32.totalorder %s177, %s179
      %p183 = scmp.eq.s32.totalorder %s17, 0
      %p184 = por %p182, %p183
      %p185 = scmp.ne.s32.totalorder %s177, %s179
      %p186 = scmp.eq.s32.totalorder %s22, 1
      %p187 = por %p185, %p186
      %p188 = scmp.ne.s32.totalorder %s179, %s180
      %p189 = scmp.eq.s32.totalorder %s22, 0
      %p190 = por %p188, %p189
      %p191 = scmp.ne.s32.totalorder %s179, %s180
      %p192 = scmp.eq.s32.totalorder %s23, 1
      %p193 = por %p191, %p192
      %p195 = scmp.ne.s32.totalorder %s180, %s194
      %p196 = scmp.eq.s32.totalorder %s23, 0
      %p197 = por %p195, %p196
      %s198 = ssub.s32 %s17, %s24
      %p199 = scmp.eq.s32.totalorder %s198, 0
      %s201 = sadd.s32 %s200, 1
      %s202 = scalar_select %p199, %s200, %s201
      %p205 = pneg %p199
      %p206 = scmp.eq.s32.totalorder %s17, 1
      %p207 = por %p205, %p206
      %p208 = scmp.ne.s32.totalorder %s200, %s203
      %p209 = scmp.eq.s32.totalorder %s17, 0
      %p210 = por %p208, %p209
      %p211 = scmp.ne.s32.totalorder %s200, %s203
      %p212 = scmp.eq.s32.totalorder %s22, 1
      %p213 = por %p211, %p212
      %p214 = scmp.ne.s32.totalorder %s203, %s204
      %p215 = scmp.eq.s32.totalorder %s22, 0
      %p216 = por %p214, %p215
      %p217 = scmp.ne.s32.totalorder %s203, %s204
      %p218 = scmp.eq.s32.totalorder %s23, 1
      %p219 = por %p217, %p218
      %p221 = scmp.ne.s32.totalorder %s204, %s220
      %p222 = scmp.eq.s32.totalorder %s23, 0
      %p223 = por %p221, %p222
      %p224 = scmp.le.s32.totalorder 1, %s17
      %p225 = scmp.lt.s32.totalorder %s17, 3
      %p226 = pnand %p224, %p225
      %p227 = pneg %p226
      // Predicated region
      $region9: #{distill_attention_forward.1} parent=5 // pred_check
        _
      $region10: #{distill_attention_forward.1} parent=5 // pred_check_branch
        %229 = sbr.rel (%p226) target = $region12
      $region11: #{distill_attention_forward.1} parent=5 // pred_region
        %s230 = ssub.s32 %s17, 1
        // Predicated region
        $region13: #{distill_attention_forward.1} parent=11 // pred_check
          %p231 = pneg %p64
        $region14: #{distill_attention_forward.1} parent=11 // pred_check_branch
          %233 = sbr.rel (%p231) target = $region16
        $region15: #{distill_attention_forward.1} parent=11 // pred_region
          _
        $region16: #{distill_attention_forward.1} parent=11 // pred_fallthru
          _
        // Predicated region
        $region17: #{distill_attention_forward.1} parent=11 // pred_check
          %p234 = pneg %p85
        $region18: #{distill_attention_forward.1} parent=11 // pred_check_branch
          %236 = sbr.rel (%p234) target = $region20
        $region19: #{distill_attention_forward.1} parent=11 // pred_region
          _
        $region20: #{distill_attention_forward.1} parent=11 // pred_fallthru
          _
        // Predicated region
        $region21: #{distill_attention_forward.1} parent=11 // pred_check
          %p237 = pneg %p106
        $region22: #{distill_attention_forward.1} parent=11 // pred_check_branch
          %239 = sbr.rel (%p237) target = $region24
        $region23: #{distill_attention_forward.1} parent=11 // pred_region
          _
        $region24: #{distill_attention_forward.1} parent=11 // pred_fallthru
          _
        // Predicated region
        $region25: #{distill_attention_forward.1} parent=11 // pred_check
          %p240 = pneg %p127
        $region26: #{distill_attention_forward.1} parent=11 // pred_check_branch
          %242 = sbr.rel (%p240) target = $region28
        $region27: #{distill_attention_forward.1} parent=11 // pred_region
          _
        $region28: #{distill_attention_forward.1} parent=11 // pred_fallthru
          _
        // Predicated region
        $region29: #{distill_attention_forward.1} parent=11 // pred_check
          %p243 = pneg %p148
        $region30: #{distill_attention_forward.1} parent=11 // pred_check_branch
          %245 = sbr.rel (%p243) target = $region32
        $region31: #{distill_attention_forward.1} parent=11 // pred_region
          _
        $region32: #{distill_attention_forward.1} parent=11 // pred_fallthru
          _
        // Predicated region
        $region33: #{distill_attention_forward.1} parent=11 // pred_check
          %p246 = pneg %p169
        $region34: #{distill_attention_forward.1} parent=11 // pred_check_branch
          %248 = sbr.rel (%p246) target = $region36
        $region35: #{distill_attention_forward.1} parent=11 // pred_region
          _
        $region36: #{distill_attention_forward.1} parent=11 // pred_fallthru
          _
        // Predicated region
        $region37: #{distill_attention_forward.1} parent=11 // pred_check
          %p249 = pneg %p190
        $region38: #{distill_attention_forward.1} parent=11 // pred_check_branch
          %251 = sbr.rel (%p249) target = $region40
        $region39: #{distill_attention_forward.1} parent=11 // pred_region
          _
        $region40: #{distill_attention_forward.1} parent=11 // pred_fallthru
          _
      $region12: #{distill_attention_forward.1} parent=5 // pred_fallthru
        _
      %p252 = scmp.lt.s32.totalorder %s17, 2
      // Predicated region
      $region41: #{distill_attention_forward.1} parent=5 // pred_check
        %p253 = pneg %p252
      $region42: #{distill_attention_forward.1} parent=5 // pred_check_branch
        %255 = sbr.rel (%p253) target = $region44
      $region43: #{distill_attention_forward.1} parent=5 // pred_region
        // Predicated region
        $region45: #{distill_attention_forward.1} parent=43 // pred_check
          %p256 = pneg %p37
        $region46: #{distill_attention_forward.1} parent=43 // pred_check_branch
          %258 = sbr.rel (%p256) target = $region48
        $region47: #{distill_attention_forward.1} parent=43 // pred_region
          %s259 = smul.u32 8, %s17
          %p260 = scmp.lt.s32.totalorder %s259, 15
          %s261 = scalar_select %p260, %s259, 15
          %s262 = smul.addr %s261, 2
          %s263 = smul.addr %s262, 4
          %s264 = scalar_lea.vmem %s0, %s263
          %s265 = smul.u32 8, %s17
        $region48: #{distill_attention_forward.1} parent=43 // pred_fallthru
          _
      $region44: #{distill_attention_forward.1} parent=5 // pred_fallthru
        _
      %p266 = scmp.le.s32.totalorder 1, %s17
      %p267 = scmp.lt.s32.totalorder %s17, 3
      %p268 = pnand %p266, %p267
      %p269 = pneg %p268
      // Predicated region
      $region49: #{distill_attention_forward.1} parent=5 // pred_check
        _
      $region50: #{distill_attention_forward.1} parent=5 // pred_check_branch
        %271 = sbr.rel (%p268) target = $region52
      $region51: #{distill_attention_forward.1} parent=5 // pred_region
        %s272 = ssub.s32 %s17, 1
        %s273 = smul.u32 8, %s22
        %p274 = scmp.lt.s32.totalorder %s273, 15
        %s275 = scalar_select %p274, %s273, 15
        %s276 = smul.addr %s275, 2
        %s277 = smul.addr %s276, 4
        %s278 = scalar_lea.vmem %s0, %s277
        %p279 = pneg %p43
        %p280 = pneg %p40
        %p281 = pneg %p64
        %p282 = pneg %p61
        %p283 = pneg %p85
        %p284 = pneg %p82
        %p285 = pneg %p106
        %p286 = pneg %p103
        %p287 = pneg %p127
        %p288 = pneg %p124
        %p289 = pneg %p148
        %p290 = pneg %p145
        %p291 = pneg %p169
        %p292 = pneg %p166
        %p293 = pneg %p190
        %p294 = pneg %p187
        %p295 = pneg %p216
        %p296 = pneg %p213
        %s297 = sand.u32 %s203, 1
        %s298 = scalar_lea.sflag [#allocation3], %s297
        %s299 = sand.u32 %s203, 1
        %s300 = smul.addr %s299, 8
        %s301 = scalar_lea.vmem [#allocation2], %s300
        %s302 = smul.u32 8, %s22
        %p303 = scmp.lt.s32.totalorder %s302, 15
        %s304 = scalar_select %p303, %s302, 15
        %s305 = smul.addr %s304, 2
        %s306 = smul.addr %s305, 4
        %s307 = scalar_lea.vmem %s0, %s306
        %s308 = smul.u32 8, %s22
        %v310 = vld [vmem:[%s307] sm:$0xf]
        %v311 = vld [vmem:[%s307 + $0x4] sm:$0xf]
        %v312 = vld [vmem:[%s307 + $0x8] sm:$0xf]
        %v313 = vld [vmem:[%s307 + $0xc] sm:$0xf]
        %v314 = vld [vmem:[%s307 + $0x10] sm:$0xf]
        %v315 = vld [vmem:[%s307 + $0x14] sm:$0xf]
        %v316 = vld [vmem:[%s307 + $0x18] sm:$0xf]
        %v317 = vld [vmem:[%s307 + $0x1c] sm:$0xf]
        %v318 = vld [vmem:[%s307 + $0x20] sm:$0xf]
        %v319 = vld [vmem:[%s307 + $0x24] sm:$0xf]
        %v320 = vld [vmem:[%s307 + $0x28] sm:$0xf]
        %v321 = vld [vmem:[%s307 + $0x2c] sm:$0xf]
        %v322 = vld [vmem:[%s307 + $0x30] sm:$0xf]
        %v323 = vld [vmem:[%s307 + $0x34] sm:$0xf]
        %v324 = vld [vmem:[%s307 + $0x38] sm:$0xf]
        %v325 = vld [vmem:[%s307 + $0x3c] sm:$0xf]
        %v326 = vld [vmem:[%s2] sm:$0xf]
        %v327 = vld [vmem:[%s2 + $0x4] sm:$0xf]
        %v328 = vld [vmem:[%s2 + $0x8] sm:$0xf]
        %v329 = vld [vmem:[%s2 + $0xc] sm:$0xf]
        %v330 = vld [vmem:[%s2 + $0x10] sm:$0xf]
        %v331 = vld [vmem:[%s2 + $0x14] sm:$0xf]
        %v332 = vld [vmem:[%s2 + $0x18] sm:$0xf]
        %v333 = vld [vmem:[%s2 + $0x1c] sm:$0xf]
        %v350 = vunpack.c.l.b16 %v310
        %v351 = vunpack.c.l.b16 %v311
        %v352 = vunpack.c.l.b16 %v312
        %v353 = vunpack.c.l.b16 %v313
        %v354 = vunpack.c.l.b16 %v314
        %v355 = vunpack.c.l.b16 %v315
        %v356 = vunpack.c.l.b16 %v316
        %v357 = vunpack.c.l.b16 %v317
        %v358 = vunpack.c.l.b16 %v318
        %v359 = vunpack.c.l.b16 %v319
        %v360 = vunpack.c.l.b16 %v320
        %v361 = vunpack.c.l.b16 %v321
        %v362 = vunpack.c.l.b16 %v322
        %v363 = vunpack.c.l.b16 %v323
        %v364 = vunpack.c.l.b16 %v324
        %v365 = vunpack.c.l.b16 %v325
        %v366 = vpack.c.b16 %v351, %v350
        %v367 = vpack.c.b16 %v353, %v352
        %v368 = vpack.c.b16 %v355, %v354
        %v369 = vpack.c.b16 %v357, %v356
        %v370 = vpack.c.b16 %v359, %v358
        %v371 = vpack.c.b16 %v361, %v360
        %v372 = vpack.c.b16 %v363, %v362
        %v373 = vpack.c.b16 %v365, %v364
        %v382 = vunpack.c.l.b16 %v326
        %v383 = vunpack.c.l.b16 %v327
        %v384 = vunpack.c.l.b16 %v328
        %v385 = vunpack.c.l.b16 %v329
        %v386 = vunpack.c.l.b16 %v330
        %v387 = vunpack.c.l.b16 %v331
        %v388 = vunpack.c.l.b16 %v332
        %v389 = vunpack.c.l.b16 %v333
        %v390 = vpack.c.b16 %v383, %v382
        %v391 = vpack.c.b16 %v385, %v384
        %v392 = vpack.c.b16 %v387, %v386
        %v393 = vpack.c.b16 %v389, %v388
        %vm398 = vcmask 523264
        %v400 = vsel %vm398, %v366, 0
        %v403 = vsel %vm398, %v367, 0
        %v406 = vsel %vm398, %v368, 0
        %v409 = vsel %vm398, %v369, 0
        %v412 = vsel %vm398, %v370, 0
        %v415 = vsel %vm398, %v371, 0
        %v418 = vsel %vm398, %v372, 0
        %v421 = vsel %vm398, %v373, 0
        %423 = vmatpush.bf16.msra.mxu0 0
        %424 = vmatpush.bf16.msra.mxu0 0
        %425 = vmatpush.bf16.msra.mxu0 0
        %426 = vmatpush.bf16.msra.mxu0 0
        %427 = vmatpush.bf16.msra.mxu0 %v393
        %428 = vmatpush.bf16.msra.mxu0 %v392
        %429 = vmatpush.bf16.msra.mxu0 %v391
        %430 = vmatpush.bf16.msra.mxu0 %v390
        %431 = vmatmul.bf16.gmra.mxu0 %v400
        %v432 = vpop.f32.mrf.mxu0
        %v433 = vadd.f32 0.0, %v432
        %v434 = vpop.f32.mrf.mxu0
        %v435 = vadd.f32 0.0, %v434
        %436 = vmatmul.bf16.gmra.mxu0 %v403
        %v437 = vpop.f32.mrf.mxu0
        %v438 = vadd.f32 0.0, %v437
        %v439 = vpop.f32.mrf.mxu0
        %v440 = vadd.f32 0.0, %v439
        %441 = vmatmul.bf16.gmra.mxu0 %v406
        %v442 = vpop.f32.mrf.mxu0
        %v443 = vadd.f32 0.0, %v442
        %v444 = vpop.f32.mrf.mxu0
        %v445 = vadd.f32 0.0, %v444
        %446 = vmatmul.bf16.gmra.mxu0 %v409
        %v447 = vpop.f32.mrf.mxu0
        %v448 = vadd.f32 0.0, %v447
        %v449 = vpop.f32.mrf.mxu0
        %v450 = vadd.f32 0.0, %v449
        %451 = vmatmul.bf16.gmra.mxu0 %v412
        %v452 = vpop.f32.mrf.mxu0
        %v453 = vadd.f32 0.0, %v452
        %v454 = vpop.f32.mrf.mxu0
        %v455 = vadd.f32 0.0, %v454
        %456 = vmatmul.bf16.gmra.mxu0 %v415
        %v457 = vpop.f32.mrf.mxu0
        %v458 = vadd.f32 0.0, %v457
        %v459 = vpop.f32.mrf.mxu0
        %v460 = vadd.f32 0.0, %v459
        %461 = vmatmul.bf16.gmra.mxu0 %v418
        %v462 = vpop.f32.mrf.mxu0
        %v463 = vadd.f32 0.0, %v462
        %v464 = vpop.f32.mrf.mxu0
        %v465 = vadd.f32 0.0, %v464
        %466 = vmatmul.bf16.gmra.mxu0 %v421
        %v467 = vpop.f32.mrf.mxu0
        %v468 = vadd.f32 0.0, %v467
        %v469 = vpop.f32.mrf.mxu0
        %v470 = vadd.f32 0.0, %v469
        %471 = vdwg.mxu0
        %v472 = vld [vmem:[%s1] sm:$0xf]
        %v473 = vld [vmem:[%s1 + $0x4] sm:$0xf]
        %v474 = vld [vmem:[%s1 + $0x8] sm:$0xf]
        %v475 = vld [vmem:[%s1 + $0xc] sm:$0xf]
        %v476 = vld [vmem:[%s1 + $0x10] sm:$0xf]
        %v477 = vld [vmem:[%s1 + $0x14] sm:$0xf]
        %v478 = vld [vmem:[%s1 + $0x18] sm:$0xf]
        %v479 = vld [vmem:[%s1 + $0x1c] sm:$0xf]
        %v480 = vpack.c.b16 %v350, %v350
        %v481 = vpack.c.b16 %v352, %v352
        %v482 = vpack.c.b16 %v354, %v354
        %v483 = vpack.c.b16 %v356, %v356
        %v484 = vpack.c.b16 %v358, %v358
        %v485 = vpack.c.b16 %v360, %v360
        %v486 = vpack.c.b16 %v362, %v362
        %v487 = vpack.c.b16 %v364, %v364
        %v488 = vunpack.c.l.b16 %v480
        %v489 = vunpack.c.l.b16 %v481
        %v490 = vunpack.c.l.b16 %v482
        %v491 = vunpack.c.l.b16 %v483
        %v492 = vunpack.c.l.b16 %v484
        %v493 = vunpack.c.l.b16 %v485
        %v494 = vunpack.c.l.b16 %v486
        %v495 = vunpack.c.l.b16 %v487
        %v496 = vrot.slane %v489, 7
        %vm497 = vcmask 1041409
        %v498 = vsel %vm497, %v496, %v488
        %v499 = vrot.slane %v490, 6
        %vm500 = vcmask 1042434
        %v501 = vsel %vm500, %v499, %v498
        %v502 = vrot.slane %v491, 5
        %vm503 = vcmask 1043459
        %v504 = vsel %vm503, %v502, %v501
        %v505 = vrot.slane %v492, 4
        %vm506 = vcmask 1044484
        %v507 = vsel %vm506, %v505, %v504
        %v508 = vrot.slane %v493, 3
        %vm509 = vcmask 1045509
        %v510 = vsel %vm509, %v508, %v507
        %v511 = vrot.slane %v494, 2
        %vm512 = vcmask 1046534
        %v513 = vsel %vm512, %v511, %v510
        %v514 = vrot.slane %v495, 1
        %vm515 = vcmask 1047559
        %v516 = vsel %vm515, %v514, %v513
        %v517 = vpack.c.b16 %v516, %v516
        %v526 = vunpack.c.l.b16 %v472
        %v527 = vunpack.c.l.b16 %v473
        %v528 = vunpack.c.l.b16 %v474
        %v529 = vunpack.c.l.b16 %v475
        %v530 = vunpack.c.l.b16 %v476
        %v531 = vunpack.c.l.b16 %v477
        %v532 = vunpack.c.l.b16 %v478
        %v533 = vunpack.c.l.b16 %v479
        %v534 = vpack.c.b16 %v527, %v526
        %v535 = vpack.c.b16 %v529, %v528
        %v536 = vpack.c.b16 %v531, %v530
        %v537 = vpack.c.b16 %v533, %v532
        %v543 = vsel %vm398, %v517, 0
        %545 = vmatpush.bf16.msra.mxu0 0
        %546 = vmatpush.bf16.msra.mxu0 0
        %547 = vmatpush.bf16.msra.mxu0 0
        %548 = vmatpush.bf16.msra.mxu0 0
        %549 = vmatpush.bf16.msra.mxu0 %v537
        %550 = vmatpush.bf16.msra.mxu0 %v536
        %551 = vmatpush.bf16.msra.mxu0 %v535
        %552 = vmatpush.bf16.msra.mxu0 %v534
        %553 = vmatmul.bf16.gmra.mxu0 %v543
        %v554 = vpop.f32.mrf.mxu0
        %v555 = vadd.f32 0.0, %v554
        %v556 = vpop.f32.mrf.mxu0
        %557 = vdwg.mxu0
        %v559 = vrot.slane %v555, 1
        %v560 = vrot.slane %v555, 2
        %v561 = vrot.slane %v555, 3
        %v562 = vrot.slane %v555, 4
        %v563 = vrot.slane %v555, 5
        %v564 = vrot.slane %v555, 6
        %v565 = vrot.slane %v555, 7
        %v566 = vperm.slane %v555, 0
        %v567 = vperm.slane %v559, 0
        %v568 = vperm.slane %v560, 0
        %v569 = vperm.slane %v561, 0
        %v570 = vperm.slane %v562, 0
        %v571 = vperm.slane %v563, 0
        %v572 = vperm.slane %v564, 0
        %v573 = vperm.slane %v565, 0
        %v582 = vmul.f32 %v433, %v566
        %v583 = vmul.f32 %v435, %v566
        %v584 = vmul.f32 %v438, %v567
        %v585 = vmul.f32 %v440, %v567
        %v586 = vmul.f32 %v443, %v568
        %v587 = vmul.f32 %v445, %v568
        %v588 = vmul.f32 %v448, %v569
        %v589 = vmul.f32 %v450, %v569
        %v590 = vmul.f32 %v453, %v570
        %v591 = vmul.f32 %v455, %v570
        %v592 = vmul.f32 %v458, %v571
        %v593 = vmul.f32 %v460, %v571
        %v594 = vmul.f32 %v463, %v572
        %v595 = vmul.f32 %v465, %v572
        %v596 = vmul.f32 %v468, %v573
        %v597 = vmul.f32 %v470, %v573
        %v598 = vld [vmem:[%s5] sm:$0xff]
        %v599 = vld [vmem:[%s5 + $0x8] sm:$0xff]
        %v600 = vld [vmem:[%s5 + $0x10] sm:$0xff]
        %v601 = vld [vmem:[%s5 + $0x18] sm:$0xff]
        %v602 = vld [vmem:[%s5 + $0x20] sm:$0xff]
        %v603 = vld [vmem:[%s5 + $0x28] sm:$0xff]
        %v604 = vld [vmem:[%s5 + $0x30] sm:$0xff]
        %v605 = vld [vmem:[%s5 + $0x38] sm:$0xff]
        %v607 = vsel %vm398, %v582, 0
        %v610 = vsel %vm398, %v583, 0
        %v613 = vsel %vm398, %v584, 0
        %v616 = vsel %vm398, %v585, 0
        %v619 = vsel %vm398, %v586, 0
        %v622 = vsel %vm398, %v587, 0
        %v625 = vsel %vm398, %v588, 0
        %v628 = vsel %vm398, %v589, 0
        %v631 = vsel %vm398, %v590, 0
        %v634 = vsel %vm398, %v591, 0
        %v637 = vsel %vm398, %v592, 0
        %v640 = vsel %vm398, %v593, 0
        %v643 = vsel %vm398, %v594, 0
        %v646 = vsel %vm398, %v595, 0
        %v649 = vsel %vm398, %v596, 0
        %v652 = vsel %vm398, %v597, 0
        %654 = vmatpush.msra.mxu0 0.0
        %655 = vmatpush.msra.mxu0 0.0
        %656 = vmatpush.msra.mxu0 0.0
        %657 = vmatpush.msra.mxu0 0.0
        %658 = vmatpush.msra.mxu0 0.0
        %659 = vmatpush.msra.mxu0 0.0
        %660 = vmatpush.msra.mxu0 0.0
        %661 = vmatpush.msra.mxu0 0.0
        %662 = vmatpush.msra.mxu0 %v605
        %663 = vmatpush.msra.mxu0 %v604
        %664 = vmatpush.msra.mxu0 %v603
        %665 = vmatpush.msra.mxu0 %v602
        %666 = vmatpush.msra.mxu0 %v601
        %667 = vmatpush.msra.mxu0 %v600
        %668 = vmatpush.msra.mxu0 %v599
        %669 = vmatpush.msra.mxu0 %v598
        %670 = vmatmul.f32.gmra.mxu0 %v607
        %v671 = vpop.f32.mrf.mxu0
        %v672 = vadd.f32 0.0, %v671
        %673 = vmatmul.f32.gmra.mxu0 %v610
        %v674 = vpop.f32.mrf.mxu0
        %v675 = vadd.f32 0.0, %v674
        %676 = vmatmul.f32.gmra.mxu0 %v613
        %v677 = vpop.f32.mrf.mxu0
        %v678 = vadd.f32 0.0, %v677
        %679 = vmatmul.f32.gmra.mxu0 %v616
        %v680 = vpop.f32.mrf.mxu0
        %v681 = vadd.f32 0.0, %v680
        %682 = vmatmul.f32.gmra.mxu0 %v619
        %v683 = vpop.f32.mrf.mxu0
        %v684 = vadd.f32 0.0, %v683
        %685 = vmatmul.f32.gmra.mxu0 %v622
        %v686 = vpop.f32.mrf.mxu0
        %v687 = vadd.f32 0.0, %v686
        %688 = vmatmul.f32.gmra.mxu0 %v625
        %v689 = vpop.f32.mrf.mxu0
        %v690 = vadd.f32 0.0, %v689
        %691 = vmatmul.f32.gmra.mxu0 %v628
        %v692 = vpop.f32.mrf.mxu0
        %v693 = vadd.f32 0.0, %v692
        %694 = vmatmul.f32.gmra.mxu0 %v631
        %v695 = vpop.f32.mrf.mxu0
        %v696 = vadd.f32 0.0, %v695
        %697 = vmatmul.f32.gmra.mxu0 %v634
        %v698 = vpop.f32.mrf.mxu0
        %v699 = vadd.f32 0.0, %v698
        %700 = vmatmul.f32.gmra.mxu0 %v637
        %v701 = vpop.f32.mrf.mxu0
        %v702 = vadd.f32 0.0, %v701
        %703 = vmatmul.f32.gmra.mxu0 %v640
        %v704 = vpop.f32.mrf.mxu0
        %v705 = vadd.f32 0.0, %v704
        %706 = vmatmul.f32.gmra.mxu0 %v643
        %v707 = vpop.f32.mrf.mxu0
        %v708 = vadd.f32 0.0, %v707
        %709 = vmatmul.f32.gmra.mxu0 %v646
        %v710 = vpop.f32.mrf.mxu0
        %v711 = vadd.f32 0.0, %v710
        %712 = vmatmul.f32.gmra.mxu0 %v649
        %v713 = vpop.f32.mrf.mxu0
        %v714 = vadd.f32 0.0, %v713
        %715 = vmatmul.f32.gmra.mxu0 %v652
        %v716 = vpop.f32.mrf.mxu0
        %v717 = vadd.f32 0.0, %v716
        %718 = vdwg.mxu0
        %v719 = vld [vmem:[%s7] sm:$0xff]
        %v720 = vld [vmem:[%s7 + $0x8] sm:$0xff]
        %v721 = vadd.f32 %v672, %v719
        %v722 = vadd.f32 %v675, %v720
        %v723 = vadd.f32 %v678, %v719
        %v724 = vadd.f32 %v681, %v720
        %v725 = vadd.f32 %v684, %v719
        %v726 = vadd.f32 %v687, %v720
        %v727 = vadd.f32 %v690, %v719
        %v728 = vadd.f32 %v693, %v720
        %v729 = vadd.f32 %v696, %v719
        %v730 = vadd.f32 %v699, %v720
        %v731 = vadd.f32 %v702, %v719
        %v732 = vadd.f32 %v705, %v720
        %v733 = vadd.f32 %v708, %v719
        %v734 = vadd.f32 %v711, %v720
        %v735 = vadd.f32 %v714, %v719
        %v736 = vadd.f32 %v717, %v720
        %vm737 = vcmask 64512
        %v738 = vsel %vm737, %v721, -inf
        %v739 = vsel %vm737, %v722, -inf
        %v740 = vmax.f32 %v738, %v739
        %v741 = vrot.slane %v740, 4
        %v742 = vmax.f32 %v740, %v741
        %v743 = vrot.slane %v742, 2
        %v744 = vmax.f32 %v742, %v743
        %v745 = vrot.slane %v744, 1
        %v746 = vmax.f32 %v744, %v745
        %v747 = vsel %vm737, %v723, -inf
        %v748 = vsel %vm737, %v724, -inf
        %v749 = vmax.f32 %v747, %v748
        %v750 = vrot.slane %v749, 4
        %v751 = vmax.f32 %v749, %v750
        %v752 = vrot.slane %v751, 2
        %v753 = vmax.f32 %v751, %v752
        %v754 = vrot.slane %v753, 1
        %v755 = vmax.f32 %v753, %v754
        %v756 = vsel %vm737, %v725, -inf
        %v757 = vsel %vm737, %v726, -inf
        %v758 = vmax.f32 %v756, %v757
        %v759 = vrot.slane %v758, 4
        %v760 = vmax.f32 %v758, %v759
        %v761 = vrot.slane %v760, 2
        %v762 = vmax.f32 %v760, %v761
        %v763 = vrot.slane %v762, 1
        %v764 = vmax.f32 %v762, %v763
        %v765 = vsel %vm737, %v727, -inf
        %v766 = vsel %vm737, %v728, -inf
        %v767 = vmax.f32 %v765, %v766
        %v768 = vrot.slane %v767, 4
        %v769 = vmax.f32 %v767, %v768
        %v770 = vrot.slane %v769, 2
        %v771 = vmax.f32 %v769, %v770
        %v772 = vrot.slane %v771, 1
        %v773 = vmax.f32 %v771, %v772
        %v774 = vsel %vm737, %v729, -inf
        %v775 = vsel %vm737, %v730, -inf
        %v776 = vmax.f32 %v774, %v775
        %v777 = vrot.slane %v776, 4
        %v778 = vmax.f32 %v776, %v777
        %v779 = vrot.slane %v778, 2
        %v780 = vmax.f32 %v778, %v779
        %v781 = vrot.slane %v780, 1
        %v782 = vmax.f32 %v780, %v781
        %v783 = vsel %vm737, %v731, -inf
        %v784 = vsel %vm737, %v732, -inf
        %v785 = vmax.f32 %v783, %v784
        %v786 = vrot.slane %v785, 4
        %v787 = vmax.f32 %v785, %v786
        %v788 = vrot.slane %v787, 2
        %v789 = vmax.f32 %v787, %v788
        %v790 = vrot.slane %v789, 1
        %v791 = vmax.f32 %v789, %v790
        %v792 = vsel %vm737, %v733, -inf
        %v793 = vsel %vm737, %v734, -inf
        %v794 = vmax.f32 %v792, %v793
        %v795 = vrot.slane %v794, 4
        %v796 = vmax.f32 %v794, %v795
        %v797 = vrot.slane %v796, 2
        %v798 = vmax.f32 %v796, %v797
        %v799 = vrot.slane %v798, 1
        %v800 = vmax.f32 %v798, %v799
        %v801 = vsel %vm737, %v735, -inf
        %v802 = vsel %vm737, %v736, -inf
        %v803 = vmax.f32 %v801, %v802
        %v804 = vrot.slane %v803, 4
        %v805 = vmax.f32 %v803, %v804
        %v806 = vrot.slane %v805, 2
        %v807 = vmax.f32 %v805, %v806
        %v808 = vrot.slane %v807, 1
        %v809 = vmax.f32 %v807, %v808
        %v810 = vsub.f32 %v721, %v746
        %v811 = vsub.f32 %v722, %v746
        %v812 = vsub.f32 %v723, %v755
        %v813 = vsub.f32 %v724, %v755
        %v814 = vsub.f32 %v725, %v764
        %v815 = vsub.f32 %v726, %v764
        %v816 = vsub.f32 %v727, %v773
        %v817 = vsub.f32 %v728, %v773
        %v818 = vsub.f32 %v729, %v782
        %v819 = vsub.f32 %v730, %v782
        %v820 = vsub.f32 %v731, %v791
        %v821 = vsub.f32 %v732, %v791
        %v822 = vsub.f32 %v733, %v800
        %v823 = vsub.f32 %v734, %v800
        %v824 = vsub.f32 %v735, %v809
        %v825 = vsub.f32 %v736, %v809
        %v826 = vmul.f32 %v810, 1.442695
        %v827 = vpow.pop %v826
        %v828 = vmul.f32 %v811, 1.442695
        %v829 = vpow.pop %v828
        %v830 = vmul.f32 %v812, 1.442695
        %v831 = vpow.pop %v830
        %v832 = vmul.f32 %v813, 1.442695
        %v833 = vpow.pop %v832
        %v834 = vmul.f32 %v814, 1.442695
        %v835 = vpow.pop %v834
        %v836 = vmul.f32 %v815, 1.442695
        %v837 = vpow.pop %v836
        %v838 = vmul.f32 %v816, 1.442695
        %v839 = vpow.pop %v838
        %v840 = vmul.f32 %v817, 1.442695
        %v841 = vpow.pop %v840
        %v842 = vmul.f32 %v818, 1.442695
        %v843 = vpow.pop %v842
        %v844 = vmul.f32 %v819, 1.442695
        %v845 = vpow.pop %v844
        %v846 = vmul.f32 %v820, 1.442695
        %v847 = vpow.pop %v846
        %v848 = vmul.f32 %v821, 1.442695
        %v849 = vpow.pop %v848
        %v850 = vmul.f32 %v822, 1.442695
        %v851 = vpow.pop %v850
        %v852 = vmul.f32 %v823, 1.442695
        %v853 = vpow.pop %v852
        %v854 = vmul.f32 %v824, 1.442695
        %v855 = vpow.pop %v854
        %v856 = vmul.f32 %v825, 1.442695
        %v857 = vpow.pop %v856
        %v858 = vsel %vm737, %v827, 0.0
        %v859 = vsel %vm737, %v829, 0.0
        %v860 = vadd.f32 %v858, %v859
        %v861 = vrot.slane %v860, 4
        %v862 = vadd.f32 %v860, %v861
        %v863 = vrot.slane %v862, 2
        %v864 = vadd.f32 %v862, %v863
        %v865 = vrot.slane %v864, 1
        %v866 = vadd.f32 %v864, %v865
        %v867 = vsel %vm737, %v831, 0.0
        %v868 = vsel %vm737, %v833, 0.0
        %v869 = vadd.f32 %v867, %v868
        %v870 = vrot.slane %v869, 4
        %v871 = vadd.f32 %v869, %v870
        %v872 = vrot.slane %v871, 2
        %v873 = vadd.f32 %v871, %v872
        %v874 = vrot.slane %v873, 1
        %v875 = vadd.f32 %v873, %v874
        %v876 = vsel %vm737, %v835, 0.0
        %v877 = vsel %vm737, %v837, 0.0
        %v878 = vadd.f32 %v876, %v877
        %v879 = vrot.slane %v878, 4
        %v880 = vadd.f32 %v878, %v879
        %v881 = vrot.slane %v880, 2
        %v882 = vadd.f32 %v880, %v881
        %v883 = vrot.slane %v882, 1
        %v884 = vadd.f32 %v882, %v883
        %v885 = vsel %vm737, %v839, 0.0
        %v886 = vsel %vm737, %v841, 0.0
        %v887 = vadd.f32 %v885, %v886
        %v888 = vrot.slane %v887, 4
        %v889 = vadd.f32 %v887, %v888
        %v890 = vrot.slane %v889, 2
        %v891 = vadd.f32 %v889, %v890
        %v892 = vrot.slane %v891, 1
        %v893 = vadd.f32 %v891, %v892
        %v894 = vsel %vm737, %v843, 0.0
        %v895 = vsel %vm737, %v845, 0.0
        %v896 = vadd.f32 %v894, %v895
        %v897 = vrot.slane %v896, 4
        %v898 = vadd.f32 %v896, %v897
        %v899 = vrot.slane %v898, 2
        %v900 = vadd.f32 %v898, %v899
        %v901 = vrot.slane %v900, 1
        %v902 = vadd.f32 %v900, %v901
        %v903 = vsel %vm737, %v847, 0.0
        %v904 = vsel %vm737, %v849, 0.0
        %v905 = vadd.f32 %v903, %v904
        %v906 = vrot.slane %v905, 4
        %v907 = vadd.f32 %v905, %v906
        %v908 = vrot.slane %v907, 2
        %v909 = vadd.f32 %v907, %v908
        %v910 = vrot.slane %v909, 1
        %v911 = vadd.f32 %v909, %v910
        %v912 = vsel %vm737, %v851, 0.0
        %v913 = vsel %vm737, %v853, 0.0
        %v914 = vadd.f32 %v912, %v913
        %v915 = vrot.slane %v914, 4
        %v916 = vadd.f32 %v914, %v915
        %v917 = vrot.slane %v916, 2
        %v918 = vadd.f32 %v916, %v917
        %v919 = vrot.slane %v918, 1
        %v920 = vadd.f32 %v918, %v919
        %v921 = vsel %vm737, %v855, 0.0
        %v922 = vsel %vm737, %v857, 0.0
        %v923 = vadd.f32 %v921, %v922
        %v924 = vrot.slane %v923, 4
        %v925 = vadd.f32 %v923, %v924
        %v926 = vrot.slane %v925, 2
        %v927 = vadd.f32 %v925, %v926
        %v928 = vrot.slane %v927, 1
        %v929 = vadd.f32 %v927, %v928
        %v930 = vrcp.pop %v866
        %v931 = vrcp.pop %v875
        %v932 = vrcp.pop %v884
        %v933 = vrcp.pop %v893
        %v934 = vrcp.pop %v902
        %v935 = vrcp.pop %v911
        %v936 = vrcp.pop %v920
        %v937 = vrcp.pop %v929
        %v938 = vmul.f32 %v827, %v930
        %v939 = vmul.f32 %v829, %v930
        %v940 = vmul.f32 %v831, %v931
        %v941 = vmul.f32 %v833, %v931
        %v942 = vmul.f32 %v835, %v932
        %v943 = vmul.f32 %v837, %v932
        %v944 = vmul.f32 %v839, %v933
        %v945 = vmul.f32 %v841, %v933
        %v946 = vmul.f32 %v843, %v934
        %v947 = vmul.f32 %v845, %v934
        %v948 = vmul.f32 %v847, %v935
        %v949 = vmul.f32 %v849, %v935
        %v950 = vmul.f32 %v851, %v936
        %v951 = vmul.f32 %v853, %v936
        %v952 = vmul.f32 %v855, %v937
        %v953 = vmul.f32 %v857, %v937
        %v954 = vld [vmem:[%s6] sm:$0xff]
        %v956 = vsel %vm737, %v938, 0
        %v959 = vsel %vm737, %v939, 0
        %v962 = vsel %vm737, %v940, 0
        %v965 = vsel %vm737, %v941, 0
        %v968 = vsel %vm737, %v942, 0
        %v971 = vsel %vm737, %v943, 0
        %v974 = vsel %vm737, %v944, 0
        %v977 = vsel %vm737, %v945, 0
        %v980 = vsel %vm737, %v946, 0
        %v983 = vsel %vm737, %v947, 0
        %v986 = vsel %vm737, %v948, 0
        %v989 = vsel %vm737, %v949, 0
        %v992 = vsel %vm737, %v950, 0
        %v995 = vsel %vm737, %v951, 0
        %v998 = vsel %vm737, %v952, 0
        %v1001 = vsel %vm737, %v953, 0
        %1003 = vmatpush.msra.mxu0 0.0
        %1004 = vmatpush.msra.mxu0 0.0
        %1005 = vmatpush.msra.mxu0 0.0
        %1006 = vmatpush.msra.mxu0 0.0
        %1007 = vmatpush.msra.mxu0 0.0
        %1008 = vmatpush.msra.mxu0 0.0
        %1009 = vmatpush.msra.mxu0 0.0
        %1010 = vmatpush.msra.mxu0 0.0
        %1011 = vmatpush.msra.mxu0 0.0
        %1012 = vmatpush.msra.mxu0 0.0
        %1013 = vmatpush.msra.mxu0 0.0
        %1014 = vmatpush.msra.mxu0 0.0
        %1015 = vmatpush.msra.mxu0 0.0
        %1016 = vmatpush.msra.mxu0 0.0
        %1017 = vmatpush.msra.mxu0 0.0
        %1018 = vmatpush.msra.mxu0 %v954
        %1019 = vmatmul.f32.gmra.mxu0 %v956
        %v1020 = vpop.f32.mrf.mxu0
        %v1021 = vadd.f32 0.0, %v1020
        %1022 = vmatmul.f32.gmra.mxu0 %v959
        %v1023 = vpop.f32.mrf.mxu0
        %v1024 = vadd.f32 0.0, %v1023
        %1025 = vmatmul.f32.gmra.mxu0 %v962
        %v1026 = vpop.f32.mrf.mxu0
        %v1027 = vadd.f32 0.0, %v1026
        %1028 = vmatmul.f32.gmra.mxu0 %v965
        %v1029 = vpop.f32.mrf.mxu0
        %v1030 = vadd.f32 0.0, %v1029
        %1031 = vmatmul.f32.gmra.mxu0 %v968
        %v1032 = vpop.f32.mrf.mxu0
        %v1033 = vadd.f32 0.0, %v1032
        %1034 = vmatmul.f32.gmra.mxu0 %v971
        %v1035 = vpop.f32.mrf.mxu0
        %v1036 = vadd.f32 0.0, %v1035
        %1037 = vmatmul.f32.gmra.mxu0 %v974
        %v1038 = vpop.f32.mrf.mxu0
        %v1039 = vadd.f32 0.0, %v1038
        %1040 = vmatmul.f32.gmra.mxu0 %v977
        %v1041 = vpop.f32.mrf.mxu0
        %v1042 = vadd.f32 0.0, %v1041
        %1043 = vmatmul.f32.gmra.mxu0 %v980
        %v1044 = vpop.f32.mrf.mxu0
        %v1045 = vadd.f32 0.0, %v1044
        %1046 = vmatmul.f32.gmra.mxu0 %v983
        %v1047 = vpop.f32.mrf.mxu0
        %v1048 = vadd.f32 0.0, %v1047
        %1049 = vmatmul.f32.gmra.mxu0 %v986
        %v1050 = vpop.f32.mrf.mxu0
        %v1051 = vadd.f32 0.0, %v1050
        %1052 = vmatmul.f32.gmra.mxu0 %v989
        %v1053 = vpop.f32.mrf.mxu0
        %v1054 = vadd.f32 0.0, %v1053
        %1055 = vmatmul.f32.gmra.mxu0 %v992
        %v1056 = vpop.f32.mrf.mxu0
        %v1057 = vadd.f32 0.0, %v1056
        %1058 = vmatmul.f32.gmra.mxu0 %v995
        %v1059 = vpop.f32.mrf.mxu0
        %v1060 = vadd.f32 0.0, %v1059
        %1061 = vmatmul.f32.gmra.mxu0 %v998
        %v1062 = vpop.f32.mrf.mxu0
        %v1063 = vadd.f32 0.0, %v1062
        %1064 = vmatmul.f32.gmra.mxu0 %v1001
        %v1065 = vpop.f32.mrf.mxu0
        %v1066 = vadd.f32 0.0, %v1065
        %1067 = vdwg.mxu0
        %1084 = vrot.lane.b32.xlu0 %v433, 64
        %v1085 = vpop.permute.xlu0 %1084
        %1086 = vrot.lane.b32.xlu0 %v435, 64
        %v1087 = vpop.permute.xlu0 %1086
        %1088 = vrot.lane.b32.xlu0 %v438, 64
        %v1089 = vpop.permute.xlu0 %1088
        %1090 = vrot.lane.b32.xlu0 %v440, 64
        %v1091 = vpop.permute.xlu0 %1090
        %1092 = vrot.lane.b32.xlu0 %v443, 64
        %v1093 = vpop.permute.xlu0 %1092
        %1094 = vrot.lane.b32.xlu0 %v445, 64
        %v1095 = vpop.permute.xlu0 %1094
        %1096 = vrot.lane.b32.xlu0 %v448, 64
        %v1097 = vpop.permute.xlu0 %1096
        %1098 = vrot.lane.b32.xlu0 %v450, 64
        %v1099 = vpop.permute.xlu0 %1098
        %1100 = vrot.lane.b32.xlu0 %v453, 64
        %v1101 = vpop.permute.xlu0 %1100
        %1102 = vrot.lane.b32.xlu0 %v455, 64
        %v1103 = vpop.permute.xlu0 %1102
        %1104 = vrot.lane.b32.xlu0 %v458, 64
        %v1105 = vpop.permute.xlu0 %1104
        %1106 = vrot.lane.b32.xlu0 %v460, 64
        %v1107 = vpop.permute.xlu0 %1106
        %1108 = vrot.lane.b32.xlu0 %v463, 64
        %v1109 = vpop.permute.xlu0 %1108
        %1110 = vrot.lane.b32.xlu0 %v465, 64
        %v1111 = vpop.permute.xlu0 %1110
        %1112 = vrot.lane.b32.xlu0 %v468, 64
        %v1113 = vpop.permute.xlu0 %1112
        %1114 = vrot.lane.b32.xlu0 %v470, 64
        %v1115 = vpop.permute.xlu0 %1114
        %v1132 = vmul.f32 %v1021, %v1085
        %v1133 = vmul.f32 %v1024, %v1087
        %v1134 = vmul.f32 %v1027, %v1089
        %v1135 = vmul.f32 %v1030, %v1091
        %v1136 = vmul.f32 %v1033, %v1093
        %v1137 = vmul.f32 %v1036, %v1095
        %v1138 = vmul.f32 %v1039, %v1097
        %v1139 = vmul.f32 %v1042, %v1099
        %v1140 = vmul.f32 %v1045, %v1101
        %v1141 = vmul.f32 %v1048, %v1103
        %v1142 = vmul.f32 %v1051, %v1105
        %v1143 = vmul.f32 %v1054, %v1107
        %v1144 = vmul.f32 %v1057, %v1109
        %v1145 = vmul.f32 %v1060, %v1111
        %v1146 = vmul.f32 %v1063, %v1113
        %v1147 = vmul.f32 %v1066, %v1115
        %v1148 = vsel %vm398, %v1132, 0.0
        %v1149 = vsel %vm398, %v1133, 0.0
        %v1150 = vadd.f32 %v1148, %v1149
        %v1151 = vrot.slane %v1150, 4
        %v1152 = vadd.f32 %v1150, %v1151
        %v1153 = vrot.slane %v1152, 2
        %v1154 = vadd.f32 %v1152, %v1153
        %v1155 = vrot.slane %v1154, 1
        %v1156 = vadd.f32 %v1154, %v1155
        %v1157 = vsel %vm398, %v1134, 0.0
        %v1158 = vsel %vm398, %v1135, 0.0
        %v1159 = vadd.f32 %v1157, %v1158
        %v1160 = vrot.slane %v1159, 4
        %v1161 = vadd.f32 %v1159, %v1160
        %v1162 = vrot.slane %v1161, 2
        %v1163 = vadd.f32 %v1161, %v1162
        %v1164 = vrot.slane %v1163, 1
        %v1165 = vadd.f32 %v1163, %v1164
        %v1166 = vsel %vm398, %v1136, 0.0
        %v1167 = vsel %vm398, %v1137, 0.0
        %v1168 = vadd.f32 %v1166, %v1167
        %v1169 = vrot.slane %v1168, 4
        %v1170 = vadd.f32 %v1168, %v1169
        %v1171 = vrot.slane %v1170, 2
        %v1172 = vadd.f32 %v1170, %v1171
        %v1173 = vrot.slane %v1172, 1
        %v1174 = vadd.f32 %v1172, %v1173
        %v1175 = vsel %vm398, %v1138, 0.0
        %v1176 = vsel %vm398, %v1139, 0.0
        %v1177 = vadd.f32 %v1175, %v1176
        %v1178 = vrot.slane %v1177, 4
        %v1179 = vadd.f32 %v1177, %v1178
        %v1180 = vrot.slane %v1179, 2
        %v1181 = vadd.f32 %v1179, %v1180
        %v1182 = vrot.slane %v1181, 1
        %v1183 = vadd.f32 %v1181, %v1182
        %v1184 = vsel %vm398, %v1140, 0.0
        %v1185 = vsel %vm398, %v1141, 0.0
        %v1186 = vadd.f32 %v1184, %v1185
        %v1187 = vrot.slane %v1186, 4
        %v1188 = vadd.f32 %v1186, %v1187
        %v1189 = vrot.slane %v1188, 2
        %v1190 = vadd.f32 %v1188, %v1189
        %v1191 = vrot.slane %v1190, 1
        %v1192 = vadd.f32 %v1190, %v1191
        %v1193 = vsel %vm398, %v1142, 0.0
        %v1194 = vsel %vm398, %v1143, 0.0
        %v1195 = vadd.f32 %v1193, %v1194
        %v1196 = vrot.slane %v1195, 4
        %v1197 = vadd.f32 %v1195, %v1196
        %v1198 = vrot.slane %v1197, 2
        %v1199 = vadd.f32 %v1197, %v1198
        %v1200 = vrot.slane %v1199, 1
        %v1201 = vadd.f32 %v1199, %v1200
        %v1202 = vsel %vm398, %v1144, 0.0
        %v1203 = vsel %vm398, %v1145, 0.0
        %v1204 = vadd.f32 %v1202, %v1203
        %v1205 = vrot.slane %v1204, 4
        %v1206 = vadd.f32 %v1204, %v1205
        %v1207 = vrot.slane %v1206, 2
        %v1208 = vadd.f32 %v1206, %v1207
        %v1209 = vrot.slane %v1208, 1
        %v1210 = vadd.f32 %v1208, %v1209
        %v1211 = vsel %vm398, %v1146, 0.0
        %v1212 = vsel %vm398, %v1147, 0.0
        %v1213 = vadd.f32 %v1211, %v1212
        %v1214 = vrot.slane %v1213, 4
        %v1215 = vadd.f32 %v1213, %v1214
        %v1216 = vrot.slane %v1215, 2
        %v1217 = vadd.f32 %v1215, %v1216
        %v1218 = vrot.slane %v1217, 1
        %v1219 = vadd.f32 %v1217, %v1218
        %v1220 = vpack.c.bf16 %v1156, %v1156
        %v1221 = vpack.c.bf16 %v1165, %v1165
        %v1222 = vpack.c.bf16 %v1174, %v1174
        %v1223 = vpack.c.bf16 %v1183, %v1183
        %v1224 = vpack.c.bf16 %v1192, %v1192
        %v1225 = vpack.c.bf16 %v1201, %v1201
        %v1226 = vpack.c.bf16 %v1210, %v1210
        %v1227 = vpack.c.bf16 %v1219, %v1219
        %v1228 = vld [vmem:[%s3] sm:$0xf]
        %v1229 = vld [vmem:[%s3 + $0x4] sm:$0xf]
        %v1230 = vld [vmem:[%s3 + $0x8] sm:$0xf]
        %v1231 = vld [vmem:[%s3 + $0xc] sm:$0xf]
        %v1232 = vld [vmem:[%s3 + $0x10] sm:$0xf]
        %v1233 = vld [vmem:[%s3 + $0x14] sm:$0xf]
        %v1234 = vld [vmem:[%s3 + $0x18] sm:$0xf]
        %v1235 = vld [vmem:[%s3 + $0x1c] sm:$0xf]
        %v1236 = vld [vmem:[%s4] sm:$0x1]
        %v1238 = vperm.slane %v1236, 0
        %v1248 = vunpack.c.l.b16 %v1220
        %v1249 = vunpack.c.l.b16 %v1221
        %v1250 = vunpack.c.l.b16 %v1222
        %v1251 = vunpack.c.l.b16 %v1223
        %v1252 = vunpack.c.l.b16 %v1224
        %v1253 = vunpack.c.l.b16 %v1225
        %v1254 = vunpack.c.l.b16 %v1226
        %v1255 = vunpack.c.l.b16 %v1227
        %v1256 = vsel %vm497, %v1249, %v1248
        %v1257 = vsel %vm500, %v1250, %v1256
        %v1258 = vsel %vm503, %v1251, %v1257
        %v1259 = vsel %vm506, %v1252, %v1258
        %v1260 = vsel %vm509, %v1253, %v1259
        %v1261 = vsel %vm512, %v1254, %v1260
        %v1262 = vsel %vm515, %v1255, %v1261
        %v1263 = vpack.c.b16 %v1262, %v1262
        %v1272 = vunpack.c.l.b16 %v1228
        %v1273 = vunpack.c.l.b16 %v1229
        %v1274 = vunpack.c.l.b16 %v1230
        %v1275 = vunpack.c.l.b16 %v1231
        %v1276 = vunpack.c.l.b16 %v1232
        %v1277 = vunpack.c.l.b16 %v1233
        %v1278 = vunpack.c.l.b16 %v1234
        %v1279 = vunpack.c.l.b16 %v1235
        %v1280 = vpack.c.b16 %v1273, %v1272
        %v1281 = vpack.c.b16 %v1275, %v1274
        %v1282 = vpack.c.b16 %v1277, %v1276
        %v1283 = vpack.c.b16 %v1279, %v1278
        %v1289 = vsel %vm398, %v1263, 0
        %1291 = vmatpush.bf16.msra.mxu0 0
        %1292 = vmatpush.bf16.msra.mxu0 0
        %1293 = vmatpush.bf16.msra.mxu0 0
        %1294 = vmatpush.bf16.msra.mxu0 0
        %1295 = vmatpush.bf16.msra.mxu0 %v1283
        %1296 = vmatpush.bf16.msra.mxu0 %v1282
        %1297 = vmatpush.bf16.msra.mxu0 %v1281
        %1298 = vmatpush.bf16.msra.mxu0 %v1280
        %1299 = vmatmul.bf16.gmra.mxu0 %v1289
        %v1300 = vpop.f32.mrf.mxu0
        %v1301 = vadd.f32 %v1238, %v1300
        %v1302 = vpop.f32.mrf.mxu0
        %1303 = vdwg.mxu0
        %1304 = vst.msk [vmem:[%s301] sm:$0xff] %vm398, %v1301
        %s1305 = sand.u32 %s203, 1
        %s1306 = scalar_lea.sflag [#allocation3], %s1305
        %s1307 = sand.u32 %s203, 1
        %s1308 = smul.addr %s1307, 8
        %s1309 = scalar_lea.vmem [#allocation2], %s1308
        // Predicated region
        $region53: #{distill_attention_forward.1} parent=51 // pred_check
          %p1310 = pneg %p213
        $region54: #{distill_attention_forward.1} parent=51 // pred_check_branch
          %1312 = sbr.rel (%p1310) target = $region56
        $region55: #{distill_attention_forward.1} parent=51 // pred_region
          %1314 = vsyncadd %s1306, 0
          %s1315 = smul.addr %s22, 8
          %s1316 = scalar_lea.hbm %s8, %s1315
          %s1318 = sshll.u32 %s1309, 4
          %s1319 = int_to_ptr.vmem [resolvable:$true] %s1318
          %s1320 = sshll.u32 %s1316, 4
          %s1321 = int_to_ptr.hbm [resolvable:$true] %s1320
          %1323 = dma.vmem_to_hbm [thread:$0]  %s1319, 128, %s1321, %s1306
        $region56: #{distill_attention_forward.1} parent=51 // pred_fallthru
          _
      $region52: #{distill_attention_forward.1} parent=5 // pred_fallthru
        _
      %p1324 = scmp.le.s32.totalorder 2, %s17
      // Predicated region
      $region57: #{distill_attention_forward.1} parent=5 // pred_check
        %p1325 = pneg %p1324
      $region58: #{distill_attention_forward.1} parent=5 // pred_check_branch
        %1327 = sbr.rel (%p1325) target = $region60
      $region59: #{distill_attention_forward.1} parent=5 // pred_region
        %s1328 = ssub.s32 %s17, 2
        // Predicated region
        $region61: #{distill_attention_forward.1} parent=59 // pred_check
          %p1329 = pneg %p219
        $region62: #{distill_attention_forward.1} parent=59 // pred_check_branch
          %1331 = sbr.rel (%p1329) target = $region64
        $region63: #{distill_attention_forward.1} parent=59 // pred_region
          %s1332 = sand.u32 %s204, 1
          %s1333 = scalar_lea.sflag [#allocation3], %s1332
          %s1334 = sand.u32 %s204, 1
          %s1335 = smul.addr %s1334, 8
          %s1336 = scalar_lea.vmem [#allocation2], %s1335
          %1338 = dma.done %s1333, 128
        $region64: #{distill_attention_forward.1} parent=59 // pred_fallthru
          _
      $region60: #{distill_attention_forward.1} parent=5 // pred_fallthru
        _
    $region6: #{distill_attention_forward.1} parent=1 // loop_footer
      %s21 = sadd.s32 1, %s17
    $region7: #{distill_attention_forward.1} parent=1 // loop_footer_branch
      %16 = sbr.rel target = $region3
    $region8: #{distill_attention_forward.1} parent=1 // loop_exit
      _
    %1339 = vsyncpa [#allocation3], 1
    %s1340 = scalar_lea.sflag [#allocation3], 1
    %1341 = vsyncpa %s1340, 1

</llo_original>
